<compile_context>
chip_gen: v7x
topology: tpu7x:2x2x1
jax: 0.10.0
libtpu: 0.0.40
codegen_flags: <defaults>
</compile_context>

<pallas_src>
import jax
import jax.numpy as jnp
from jax import lax
from jax.experimental import pallas as pl
from jax.experimental.pallas import tpu as pltpu

# ----------------------------- configuration --------------------------------
NUM_CLASSES = 5          # configer.get('data', 'num_classes')
POOLED_HW = (2, 2)       # configer.get('roi', 'pooled_hw')
SPATIAL_STRIDE = 4       # configer.get('roi', 'spatial_stride')
HIDDEN = 128             # small stand-in for VGG-16's 4096-wide classifier
N, C, H, W = 2, 4, 16, 16
R = 8                    # total number of RoIs (R')
PH, PW = POOLED_HW
IN_FEATURES = C * PH * PW                        # pool.view(R, -1) width = 16

LANE = 128
TILE_R = 16                                      # bf16 sublane-pack minimum
HEAD_DIM = NUM_CLASSES * 4 + NUM_CLASSES         # 25: (cls_loc | score) fused
HEAD_PAD = ((HEAD_DIM + LANE - 1) // LANE) * LANE        # 128, lane-dense out
META_W = 1 + 2 * PH + 2 * PW                     # [bidx, hs*, he*, ws*, we*]


def _round_up(x, m):
    return ((x + m - 1) // m) * m


# ------------------------- RoI max pooling kernel ----------------------------
def roi_pool_kernel(meta_ref, x_ref, out_ref):
    """One RoI per grid step.  meta_ref (SMEM, int32) holds per-RoI batch index
    and integer bin bounds; x_ref is the (1, H, W, C) image block for that RoI
    (channels on the lane axis); out_ref is (1, PH*PW, C) pooled maxima."""
    r = pl.program_id(0)
    feat = x_ref[0]                                               # (H, W, C)
    row = lax.broadcasted_iota(jnp.int32, (H, W, 1), 0)
    col = lax.broadcasted_iota(jnp.int32, (H, W, 1), 1)
    bins = []
    for i in range(PH):
        hs = meta_ref[r, 1 + i]
        he = meta_ref[r, 1 + PH + i]
        for j in range(PW):
            ws = meta_ref[r, 1 + 2 * PH + j]
            we = meta_ref[r, 1 + 2 * PH + PW + j]
            mask = (row >= hs) & (row < he) & (col >= ws) & (col < we)
            vals = jnp.where(mask, feat, -jnp.inf)                # (H, W, C)
            m = jnp.max(jnp.max(vals, axis=0), axis=0, keepdims=True)  # (1, C)
            is_empty = (he <= hs) | (we <= ws)
            m = jnp.where(is_empty, jnp.zeros_like(m), m)         # empty -> 0
            bins.append(m)
    out_ref[0] = jnp.concatenate(bins, axis=0)                    # (PH*PW, C)


def roi_pool_pallas(x_nhwc, roi_meta):
    """x_nhwc: (N, H, W, C) f32.  roi_meta: (R, META_W) int32 scalar-prefetch."""
    r = roi_meta.shape[0]
    return pl.pallas_call(
        roi_pool_kernel,
        out_shape=jax.ShapeDtypeStruct((r, PH * PW, C), jnp.float32),
        grid_spec=pltpu.PrefetchScalarGridSpec(
            num_scalar_prefetch=1,
            grid=(r,),
            in_specs=[
                # batch index comes from the scalar-prefetched RoI metadata
                pl.BlockSpec((1, H, W, C), lambda i, meta: (meta[i, 0], 0, 0, 0)),
            ],
            out_specs=pl.BlockSpec((1, PH * PW, C), lambda i, meta: (i, 0, 0)),
        ),
        compiler_params=pltpu.CompilerParams(
            dimension_semantics=("arbitrary",),
        ),
    )(roi_meta, x_nhwc)


def compute_roi_meta(indices_and_rois, spatial_scale, h, w):
    """Per-RoI integer bin bounds (torchvision RoIPool semantics), packed as
    int32 (R, META_W) = [batch, hstart[PH], hend[PH], wstart[PW], wend[PW]]."""
    b = indices_and_rois[:, 0].astype(jnp.int32)
    x1 = jnp.round(indices_and_rois[:, 1] * spatial_scale).astype(jnp.int32)
    y1 = jnp.round(indices_and_rois[:, 2] * spatial_scale).astype(jnp.int32)
    x2 = jnp.round(indices_and_rois[:, 3] * spatial_scale).astype(jnp.int32)
    y2 = jnp.round(indices_and_rois[:, 4] * spatial_scale).astype(jnp.int32)
    roi_w = jnp.maximum(x2 - x1 + 1, 1).astype(jnp.float32)
    roi_h = jnp.maximum(y2 - y1 + 1, 1).astype(jnp.float32)
    bin_w = roi_w / PW
    bin_h = roi_h / PH
    ii = jnp.arange(PH, dtype=jnp.float32)
    jj = jnp.arange(PW, dtype=jnp.float32)
    hstart = jnp.clip(jnp.floor(ii[None] * bin_h[:, None]).astype(jnp.int32)
                      + y1[:, None], 0, h)
    hend = jnp.clip(jnp.ceil((ii[None] + 1.0) * bin_h[:, None]).astype(jnp.int32)
                    + y1[:, None], 0, h)
    wstart = jnp.clip(jnp.floor(jj[None] * bin_w[:, None]).astype(jnp.int32)
                      + x1[:, None], 0, w)
    wend = jnp.clip(jnp.ceil((jj[None] + 1.0) * bin_w[:, None]).astype(jnp.int32)
                    + x1[:, None], 0, w)
    return jnp.concatenate([b[:, None], hstart, hend, wstart, wend], axis=1)


# --------------------- classifier + fused detection head ---------------------
def bbox_head_kernel(pool_ref, w6_ref, b6_ref, w7_ref, b7_ref,
                     wh_ref, bh_ref, out_ref):
    """fc6+ReLU, fc7+ReLU (bf16 weights, f32 acc) and fused (cls_loc|score)
    head in f32.  The single output block is lane-dense (TILE_R, 128)."""
    pool = pool_ref[...]                                          # bf16 (Tr, 16)
    fc6 = jnp.dot(pool, w6_ref[...],
                  preferred_element_type=jnp.float32) + b6_ref[...]
    fc6 = jnp.maximum(fc6, 0.0).astype(jnp.bfloat16)              # ReLU
    fc7 = jnp.dot(fc6, w7_ref[...],
                  preferred_element_type=jnp.float32) + b7_ref[...]
    fc7 = jnp.maximum(fc7, 0.0)                                   # ReLU, keep f32
    out_ref[...] = (jnp.dot(fc7, wh_ref[...],
                            preferred_element_type=jnp.float32) + bh_ref[...])


def bbox_head_pallas(pool_pad, w6, b6, w7, b7, wh, bh):
    """pool_pad: (R_pad, IN_FEATURES) bf16 with R_pad a multiple of TILE_R."""
    r_pad = pool_pad.shape[0]
    grid = (r_pad // TILE_R,)
    return pl.pallas_call(
        bbox_head_kernel,
        out_shape=jax.ShapeDtypeStruct((r_pad, HEAD_PAD), jnp.float32),
        grid_spec=pltpu.PrefetchScalarGridSpec(
            num_scalar_prefetch=0,
            grid=grid,
            in_specs=[
                pl.BlockSpec((TILE_R, IN_FEATURES), lambda i: (i, 0)),  # pool
                pl.BlockSpec((IN_FEATURES, HIDDEN), lambda i: (0, 0)),  # w6 bf16
                pl.BlockSpec((1, HIDDEN), lambda i: (0, 0)),            # b6 f32
                pl.BlockSpec((HIDDEN, HIDDEN), lambda i: (0, 0)),       # w7 bf16
                pl.BlockSpec((1, HIDDEN), lambda i: (0, 0)),            # b7 f32
                pl.BlockSpec((HIDDEN, HEAD_PAD), lambda i: (0, 0)),     # head W f32
                pl.BlockSpec((1, HEAD_PAD), lambda i: (0, 0)),          # head b f32
            ],
            out_specs=pl.BlockSpec((TILE_R, HEAD_PAD), lambda i: (i, 0)),
        ),
        compiler_params=pltpu.CompilerParams(
            # Shards RoI tiles across v7x's 2 TCs once the grid has >=2 steps.
            dimension_semantics=("parallel",),
        ),
    )(pool_pad, w6, b6, w7, b7, wh, bh)


# ----------------------------- parameter init --------------------------------
def init_params(key):
    k6, k7, kl, ks = jax.random.split(key, 4)
    # classifier fc6 / fc7 (VGG-style two-layer MLP), weights stored (in, out)
    w6 = jax.random.normal(k6, (IN_FEATURES, HIDDEN), jnp.float32) * 0.01
    b6 = jnp.zeros((1, HIDDEN), jnp.float32)
    w7 = jax.random.normal(k7, (HIDDEN, HIDDEN), jnp.float32) * 0.01
    b7 = jnp.zeros((1, HIDDEN), jnp.float32)
    # normal_init(cls_loc, 0, 0.001);  normal_init(score, 0, 0.01); biases zero
    wl = jax.random.normal(kl, (HIDDEN, NUM_CLASSES * 4), jnp.float32) * 0.001
    ws = jax.random.normal(ks, (HIDDEN, NUM_CLASSES), jnp.float32) * 0.01

    # Permute w6 rows from PyTorch's pool.view(R,-1) order (c*PH*PW + bin) to
    # the kernel's bin-major / channel-minor order (bin*C + c).  Forward math
    # is identical to `pool_nchw.view(R,-1) @ w6`.
    perm = jnp.array([c * (PH * PW) + b for b in range(PH * PW) for c in range(C)],
                     dtype=jnp.int32)
    w6_p = w6[perm].astype(jnp.bfloat16)
    w7_p = w7.astype(jnp.bfloat16)

    # Fused (cls_loc | score) head in f32 (bbox deltas are precision-sensitive),
    # zero-padded to a lane-dense 128-wide output; both biases are zero.
    wh = jnp.zeros((HIDDEN, HEAD_PAD), jnp.float32)
    wh = wh.at[:, :NUM_CLASSES * 4].set(wl)
    wh = wh.at[:, NUM_CLASSES * 4:HEAD_DIM].set(ws)
    bh = jnp.zeros((1, HEAD_PAD), jnp.float32)
    return (w6_p, b6, w7_p, b7, wh, bh)


# ------------------------------- forward pass --------------------------------
@jax.jit
def bbox_head_forward(x, indices_and_rois, params):
    (w6, b6, w7, b7, wh, bh) = params
    n, c, h, w = x.shape

    # NCHW -> NHWC so channels sit on the 128-lane axis inside the pool kernel.
    x_nhwc = jnp.transpose(x, (0, 2, 3, 1))
    roi_meta = compute_roi_meta(indices_and_rois, 1.0 / SPATIAL_STRIDE, h, w)
    pool = roi_pool_pallas(x_nhwc, roi_meta)               # (R, PH*PW, C) f32

    r = pool.shape[0]
    pool_flat = pool.reshape(r, PH * PW * C).astype(jnp.bfloat16)

    # Pad RoI rows to the tile size (no lane padding — K=16 fed as-is).
    r_pad = _round_up(r, TILE_R)
    pool_pad = jnp.pad(pool_flat, ((0, r_pad - r), (0, 0)))

    out = bbox_head_pallas(pool_pad, w6, b6, w7, b7, wh, bh)
    # Slice the fused, zero-padded head output exactly — padding never leaks.
    roi_cls_locs = out[:r, :NUM_CLASSES * 4]
    roi_scores = out[:r, NUM_CLASSES * 4:NUM_CLASSES * 4 + NUM_CLASSES]
    return roi_cls_locs, roi_scores


# ---------------------------------- main --------------------------------------
if __name__ == "__main__":
    key = jax.random.PRNGKey(0)
    kx, kroi, kparams = jax.random.split(key, 3)

    x = jax.random.normal(kx, (N, C, H, W), jnp.float32)

    # build deterministic RoIs: [batch_idx, x1, y1, x2, y2] in image coords
    batch_idx = jnp.arange(R, dtype=jnp.float32) % N
    xy1 = jax.random.uniform(kroi, (R, 2), jnp.float32,
                             minval=0.0, maxval=(W * SPATIAL_STRIDE) / 2)
    wh_box = jax.random.uniform(jax.random.fold_in(kroi, 1), (R, 2), jnp.float32,
                                minval=8.0, maxval=(W * SPATIAL_STRIDE) / 2)
    xy2 = jnp.clip(xy1 + wh_box, 0.0, W * SPATIAL_STRIDE - 1.0)
    indices_and_rois = jnp.concatenate([batch_idx[:, None], xy1, xy2], axis=1)

    params = init_params(kparams)

    roi_cls_locs, roi_scores = bbox_head_forward(x, indices_and_rois, params)
    jax.block_until_ready((roi_cls_locs, roi_scores))

    assert roi_cls_locs.shape == (R, NUM_CLASSES * 4)
    assert roi_scores.shape == (R, NUM_CLASSES)
    assert bool(jnp.all(jnp.isfinite(roi_cls_locs)))
    assert bool(jnp.all(jnp.isfinite(roi_scores)))
    print("KERNEL_OK")
</pallas_src>

<mosaic_0001>
module attributes {stable_mosaic.version = 11 : i64} {
  func.func @roi_pool_kernel(%arg0: i32, %arg1: memref<8x9xi32, #tpu.memory_space<smem>>, %arg2: memref<1x16x16x4xf32, #tpu.memory_space<vmem>>, %arg3: memref<1x4x4xf32, #tpu.memory_space<vmem>>) attributes {dimension_semantics = [#tpu.dimension_semantics<arbitrary>], iteration_bounds = array<i64: 8>, scalar_prefetch = 1 : i64, scratch_operands = 0 : i64, tpu.core_type = #tpu.core_type<tc>, window_params = [{transform_indices = @transform_0, window_bounds = array<i64: 1, 16, 16, 4>}, {transform_indices = @transform_1, window_bounds = array<i64: 1, 4, 4>}]} {
    %c0 = arith.constant 0 : index
    %c0_0 = arith.constant 0 : index
    %c0_1 = arith.constant 0 : index
    %c0_2 = arith.constant 0 : index
    %0 = vector.load %arg2[%c0, %c0_0, %c0_1, %c0_2] : memref<1x16x16x4xf32, #tpu.memory_space<vmem>>, vector<1x16x16x4xf32>
    %1 = vector.shape_cast %0 : vector<1x16x16x4xf32> to vector<16x16x4xf32>
    %2 = tpu.iota {dimensions = array<i32: 0>} : vector<16x16x1xi32>
    %3 = tpu.iota {dimensions = array<i32: 1>} : vector<16x16x1xi32>
    %4 = arith.index_cast %arg0 : i32 to index
    %c1 = arith.constant 1 : index
    %5 = memref.load %arg1[%4, %c1] : memref<8x9xi32, #tpu.memory_space<smem>>
    %6 = arith.index_cast %arg0 : i32 to index
    %c3 = arith.constant 3 : index
    %7 = memref.load %arg1[%6, %c3] : memref<8x9xi32, #tpu.memory_space<smem>>
    %8 = arith.index_cast %arg0 : i32 to index
    %c5 = arith.constant 5 : index
    %9 = memref.load %arg1[%8, %c5] : memref<8x9xi32, #tpu.memory_space<smem>>
    %10 = arith.index_cast %arg0 : i32 to index
    %c7 = arith.constant 7 : index
    %11 = memref.load %arg1[%10, %c7] : memref<8x9xi32, #tpu.memory_space<smem>>
    %12 = vector.broadcast %5 : i32 to vector<16x16x1xi32>
    %13 = arith.cmpi sge, %2, %12 : vector<16x16x1xi32>
    %14 = vector.broadcast %7 : i32 to vector<16x16x1xi32>
    %15 = arith.cmpi slt, %2, %14 : vector<16x16x1xi32>
    %16 = arith.andi %13, %15 : vector<16x16x1xi1>
    %17 = vector.broadcast %9 : i32 to vector<16x16x1xi32>
    %18 = arith.cmpi sge, %3, %17 : vector<16x16x1xi32>
    %19 = arith.andi %16, %18 : vector<16x16x1xi1>
    %20 = vector.broadcast %11 : i32 to vector<16x16x1xi32>
    %21 = arith.cmpi slt, %3, %20 : vector<16x16x1xi32>
    %22 = arith.andi %19, %21 : vector<16x16x1xi1>
    %cst = arith.constant 0xFF800000 : f32
    %23 = vector.shape_cast %22 : vector<16x16x1xi1> to vector<16x16x1xi1>
    %24 = vector.broadcast %23 : vector<16x16x1xi1> to vector<16x16x4xi1>
    %25 = vector.broadcast %cst : f32 to vector<16x16x4xf32>
    %26 = arith.select %24, %1, %25 : vector<16x16x4xi1>, vector<16x16x4xf32>
    %cst_3 = arith.constant dense<0xFF800000> : vector<16x4xf32>
    %27 = vector.multi_reduction <maximumf>, %26, %cst_3 [0] : vector<16x16x4xf32> to vector<16x4xf32>
    %cst_4 = arith.constant dense<0xFF800000> : vector<4xf32>
    %28 = vector.multi_reduction <maximumf>, %27, %cst_4 [0] : vector<16x4xf32> to vector<4xf32>
    %29 = vector.shape_cast %28 : vector<4xf32> to vector<1x4xf32>
    %30 = arith.cmpi sle, %7, %5 : i32
    %31 = arith.cmpi sle, %11, %9 : i32
    %32 = arith.ori %30, %31 : i1
    %cst_5 = arith.constant 0.000000e+00 : f32
    %33 = vector.broadcast %cst_5 : f32 to vector<1x4xf32>
    %34 = arith.select %32, %33, %29 : vector<1x4xf32>
    %35 = arith.index_cast %arg0 : i32 to index
    %c6 = arith.constant 6 : index
    %36 = memref.load %arg1[%35, %c6] : memref<8x9xi32, #tpu.memory_space<smem>>
    %37 = arith.index_cast %arg0 : i32 to index
    %c8 = arith.constant 8 : index
    %38 = memref.load %arg1[%37, %c8] : memref<8x9xi32, #tpu.memory_space<smem>>
    %39 = vector.broadcast %5 : i32 to vector<16x16x1xi32>
    %40 = arith.cmpi sge, %2, %39 : vector<16x16x1xi32>
    %41 = vector.broadcast %7 : i32 to vector<16x16x1xi32>
    %42 = arith.cmpi slt, %2, %41 : vector<16x16x1xi32>
    %43 = arith.andi %40, %42 : vector<16x16x1xi1>
    %44 = vector.broadcast %36 : i32 to vector<16x16x1xi32>
    %45 = arith.cmpi sge, %3, %44 : vector<16x16x1xi32>
    %46 = arith.andi %43, %45 : vector<16x16x1xi1>
    %47 = vector.broadcast %38 : i32 to vector<16x16x1xi32>
    %48 = arith.cmpi slt, %3, %47 : vector<16x16x1xi32>
    %49 = arith.andi %46, %48 : vector<16x16x1xi1>
    %cst_6 = arith.constant 0xFF800000 : f32
    %50 = vector.shape_cast %49 : vector<16x16x1xi1> to vector<16x16x1xi1>
    %51 = vector.broadcast %50 : vector<16x16x1xi1> to vector<16x16x4xi1>
    %52 = vector.broadcast %cst_6 : f32 to vector<16x16x4xf32>
    %53 = arith.select %51, %1, %52 : vector<16x16x4xi1>, vector<16x16x4xf32>
    %cst_7 = arith.constant dense<0xFF800000> : vector<16x4xf32>
    %54 = vector.multi_reduction <maximumf>, %53, %cst_7 [0] : vector<16x16x4xf32> to vector<16x4xf32>
    %cst_8 = arith.constant dense<0xFF800000> : vector<4xf32>
    %55 = vector.multi_reduction <maximumf>, %54, %cst_8 [0] : vector<16x4xf32> to vector<4xf32>
    %56 = vector.shape_cast %55 : vector<4xf32> to vector<1x4xf32>
    %57 = arith.cmpi sle, %7, %5 : i32
    %58 = arith.cmpi sle, %38, %36 : i32
    %59 = arith.ori %57, %58 : i1
    %cst_9 = arith.constant 0.000000e+00 : f32
    %60 = vector.broadcast %cst_9 : f32 to vector<1x4xf32>
    %61 = arith.select %59, %60, %56 : vector<1x4xf32>
    %62 = arith.index_cast %arg0 : i32 to index
    %c2 = arith.constant 2 : index
    %63 = memref.load %arg1[%62, %c2] : memref<8x9xi32, #tpu.memory_space<smem>>
    %64 = arith.index_cast %arg0 : i32 to index
    %c4 = arith.constant 4 : index
    %65 = memref.load %arg1[%64, %c4] : memref<8x9xi32, #tpu.memory_space<smem>>
    %66 = arith.index_cast %arg0 : i32 to index
    %c5_10 = arith.constant 5 : index
    %67 = memref.load %arg1[%66, %c5_10] : memref<8x9xi32, #tpu.memory_space<smem>>
    %68 = arith.index_cast %arg0 : i32 to index
    %c7_11 = arith.constant 7 : index
    %69 = memref.load %arg1[%68, %c7_11] : memref<8x9xi32, #tpu.memory_space<smem>>
    %70 = vector.broadcast %63 : i32 to vector<16x16x1xi32>
    %71 = arith.cmpi sge, %2, %70 : vector<16x16x1xi32>
    %72 = vector.broadcast %65 : i32 to vector<16x16x1xi32>
    %73 = arith.cmpi slt, %2, %72 : vector<16x16x1xi32>
    %74 = arith.andi %71, %73 : vector<16x16x1xi1>
    %75 = vector.broadcast %67 : i32 to vector<16x16x1xi32>
    %76 = arith.cmpi sge, %3, %75 : vector<16x16x1xi32>
    %77 = arith.andi %74, %76 : vector<16x16x1xi1>
    %78 = vector.broadcast %69 : i32 to vector<16x16x1xi32>
    %79 = arith.cmpi slt, %3, %78 : vector<16x16x1xi32>
    %80 = arith.andi %77, %79 : vector<16x16x1xi1>
    %cst_12 = arith.constant 0xFF800000 : f32
    %81 = vector.shape_cast %80 : vector<16x16x1xi1> to vector<16x16x1xi1>
    %82 = vector.broadcast %81 : vector<16x16x1xi1> to vector<16x16x4xi1>
    %83 = vector.broadcast %cst_12 : f32 to vector<16x16x4xf32>
    %84 = arith.select %82, %1, %83 : vector<16x16x4xi1>, vector<16x16x4xf32>
    %cst_13 = arith.constant dense<0xFF800000> : vector<16x4xf32>
    %85 = vector.multi_reduction <maximumf>, %84, %cst_13 [0] : vector<16x16x4xf32> to vector<16x4xf32>
    %cst_14 = arith.constant dense<0xFF800000> : vector<4xf32>
    %86 = vector.multi_reduction <maximumf>, %85, %cst_14 [0] : vector<16x4xf32> to vector<4xf32>
    %87 = vector.shape_cast %86 : vector<4xf32> to vector<1x4xf32>
    %88 = arith.cmpi sle, %65, %63 : i32
    %89 = arith.cmpi sle, %69, %67 : i32
    %90 = arith.ori %88, %89 : i1
    %cst_15 = arith.constant 0.000000e+00 : f32
    %91 = vector.broadcast %cst_15 : f32 to vector<1x4xf32>
    %92 = arith.select %90, %91, %87 : vector<1x4xf32>
    %93 = arith.index_cast %arg0 : i32 to index
    %c6_16 = arith.constant 6 : index
    %94 = memref.load %arg1[%93, %c6_16] : memref<8x9xi32, #tpu.memory_space<smem>>
    %95 = arith.index_cast %arg0 : i32 to index
    %c8_17 = arith.constant 8 : index
    %96 = memref.load %arg1[%95, %c8_17] : memref<8x9xi32, #tpu.memory_space<smem>>
    %97 = vector.broadcast %63 : i32 to vector<16x16x1xi32>
    %98 = arith.cmpi sge, %2, %97 : vector<16x16x1xi32>
    %99 = vector.broadcast %65 : i32 to vector<16x16x1xi32>
    %100 = arith.cmpi slt, %2, %99 : vector<16x16x1xi32>
    %101 = arith.andi %98, %100 : vector<16x16x1xi1>
    %102 = vector.broadcast %94 : i32 to vector<16x16x1xi32>
    %103 = arith.cmpi sge, %3, %102 : vector<16x16x1xi32>
    %104 = arith.andi %101, %103 : vector<16x16x1xi1>
    %105 = vector.broadcast %96 : i32 to vector<16x16x1xi32>
    %106 = arith.cmpi slt, %3, %105 : vector<16x16x1xi32>
    %107 = arith.andi %104, %106 : vector<16x16x1xi1>
    %cst_18 = arith.constant 0xFF800000 : f32
    %108 = vector.shape_cast %107 : vector<16x16x1xi1> to vector<16x16x1xi1>
    %109 = vector.broadcast %108 : vector<16x16x1xi1> to vector<16x16x4xi1>
    %110 = vector.broadcast %cst_18 : f32 to vector<16x16x4xf32>
    %111 = arith.select %109, %1, %110 : vector<16x16x4xi1>, vector<16x16x4xf32>
    %cst_19 = arith.constant dense<0xFF800000> : vector<16x4xf32>
    %112 = vector.multi_reduction <maximumf>, %111, %cst_19 [0] : vector<16x16x4xf32> to vector<16x4xf32>
    %cst_20 = arith.constant dense<0xFF800000> : vector<4xf32>
    %113 = vector.multi_reduction <maximumf>, %112, %cst_20 [0] : vector<16x4xf32> to vector<4xf32>
    %114 = vector.shape_cast %113 : vector<4xf32> to vector<1x4xf32>
    %115 = arith.cmpi sle, %65, %63 : i32
    %116 = arith.cmpi sle, %96, %94 : i32
    %117 = arith.ori %115, %116 : i1
    %cst_21 = arith.constant 0.000000e+00 : f32
    %118 = vector.broadcast %cst_21 : f32 to vector<1x4xf32>
    %119 = arith.select %117, %118, %114 : vector<1x4xf32>
    %120 = tpu.concatenate %34, %61, %92, %119 in 0 : vector<1x4xf32>, vector<1x4xf32>, vector<1x4xf32>, vector<1x4xf32> -> vector<4x4xf32>
    %c0_22 = arith.constant 0 : index
    %c0_23 = arith.constant 0 : index
    %c0_24 = arith.constant 0 : index
    %121 = vector.load %arg3[%c0_22, %c0_23, %c0_24] : memref<1x4x4xf32, #tpu.memory_space<vmem>>, vector<1x4x4xf32>
    %122 = vector.shape_cast %121 : vector<1x4x4xf32> to vector<4x4xf32>
    %123 = vector.shape_cast %120 : vector<4x4xf32> to vector<1x4x4xf32>
    tpu.vector_store %arg3[%c0_22, %c0_23, %c0_24], %123 {strides = array<i32>} : memref<1x4x4xf32, #tpu.memory_space<vmem>>, vector<1x4x4xf32>,
    return
  }
  func.func @transform_0(%arg0: i32, %arg1: memref<8x9xi32, #tpu.memory_space<smem>>) -> (i32, i32, i32, i32) {
    %0 = arith.index_cast %arg0 : i32 to index
    %c0 = arith.constant 0 : index
    %1 = memref.load %arg1[%0, %c0] : memref<8x9xi32, #tpu.memory_space<smem>>
    %c0_i32 = arith.constant 0 : i32
    %c0_i32_0 = arith.constant 0 : i32
    %c0_i32_1 = arith.constant 0 : i32
    %c0_i32_2 = arith.constant 0 : i32
    return %1, %c0_i32, %c0_i32_0, %c0_i32_1 : i32, i32, i32, i32
  }
  func.func @transform_1(%arg0: i32, %arg1: memref<8x9xi32, #tpu.memory_space<smem>>) -> (i32, i32, i32) {
    %c0_i32 = arith.constant 0 : i32
    %c0_i32_0 = arith.constant 0 : i32
    %c0_i32_1 = arith.constant 0 : i32
    return %arg0, %c0_i32, %c0_i32_0 : i32, i32, i32
  }
}

module attributes {stable_mosaic.version = 11 : i64} {
  func.func @bbox_head_kernel(%arg0: i32, %arg1: memref<16x16xbf16, #tpu.memory_space<vmem>>, %arg2: memref<16x128xbf16, #tpu.memory_space<vmem>>, %arg3: memref<1x128xf32, #tpu.memory_space<vmem>>, %arg4: memref<128x128xbf16, #tpu.memory_space<vmem>>, %arg5: memref<1x128xf32, #tpu.memory_space<vmem>>, %arg6: memref<128x128xf32, #tpu.memory_space<vmem>>, %arg7: memref<1x128xf32, #tpu.memory_space<vmem>>, %arg8: memref<16x128xf32, #tpu.memory_space<vmem>>) attributes {dimension_semantics = [#tpu.dimension_semantics<parallel>], iteration_bounds = array<i64: 1>, scalar_prefetch = 0 : i64, scratch_operands = 0 : i64, tpu.core_type = #tpu.core_type<tc>, window_params = [{transform_indices = @transform_0, window_bounds = array<i64: 16, 16>}, {pipeline_mode = #tpu.pipeline_mode<synchronous>, transform_indices = @transform_1, window_bounds = array<i64: 16, 128>}, {pipeline_mode = #tpu.pipeline_mode<synchronous>, transform_indices = @transform_2, window_bounds = array<i64: 1, 128>}, {pipeline_mode = #tpu.pipeline_mode<synchronous>, transform_indices = @transform_3, window_bounds = array<i64: 128, 128>}, {pipeline_mode = #tpu.pipeline_mode<synchronous>, transform_indices = @transform_4, window_bounds = array<i64: 1, 128>}, {pipeline_mode = #tpu.pipeline_mode<synchronous>, transform_indices = @transform_5, window_bounds = array<i64: 128, 128>}, {pipeline_mode = #tpu.pipeline_mode<synchronous>, transform_indices = @transform_6, window_bounds = array<i64: 1, 128>}, {transform_indices = @transform_7, window_bounds = array<i64: 16, 128>}]} {
    %c0 = arith.constant 0 : index
    %c0_0 = arith.constant 0 : index
    %0 = vector.load %arg1[%c0, %c0_0] : memref<16x16xbf16, #tpu.memory_space<vmem>>, vector<16x16xbf16>
    %c0_1 = arith.constant 0 : index
    %c0_2 = arith.constant 0 : index
    %1 = vector.load %arg2[%c0_1, %c0_2] : memref<16x128xbf16, #tpu.memory_space<vmem>>, vector<16x128xbf16>
    %cst = arith.constant dense<0.000000e+00> : vector<16x128xf32>
    %2 = tpu.matmul %0, %1, %cst {dimension_numbers = #tpu.dot_dimension_numbers<[1], [0], [0], [1], [0, 0, 1, 1], [], []>} : vector<16x16xbf16>, vector<16x128xbf16>, vector<16x128xf32> -> vector<16x128xf32>
    %c0_3 = arith.constant 0 : index
    %c0_4 = arith.constant 0 : index
    %3 = vector.load %arg3[%c0_3, %c0_4] : memref<1x128xf32, #tpu.memory_space<vmem>>, vector<1x128xf32>
    %4 = vector.broadcast %3 : vector<1x128xf32> to vector<16x128xf32>
    %5 = arith.addf %2, %4 : vector<16x128xf32>
    %cst_5 = arith.constant 0.000000e+00 : f32
    %6 = vector.broadcast %cst_5 : f32 to vector<16x128xf32>
    %7 = arith.maximumf %5, %6 : vector<16x128xf32>
    %8 = arith.truncf %7 : vector<16x128xf32> to vector<16x128xbf16>
    %c0_6 = arith.constant 0 : index
    %c0_7 = arith.constant 0 : index
    %9 = vector.load %arg4[%c0_6, %c0_7] : memref<128x128xbf16, #tpu.memory_space<vmem>>, vector<128x128xbf16>
    %cst_8 = arith.constant dense<0.000000e+00> : vector<16x128xf32>
    %10 = tpu.matmul %8, %9, %cst_8 {dimension_numbers = #tpu.dot_dimension_numbers<[1], [0], [0], [1], [0, 0, 1, 1], [], []>} : vector<16x128xbf16>, vector<128x128xbf16>, vector<16x128xf32> -> vector<16x128xf32>
    %c0_9 = arith.constant 0 : index
    %c0_10 = arith.constant 0 : index
    %11 = vector.load %arg5[%c0_9, %c0_10] : memref<1x128xf32, #tpu.memory_space<vmem>>, vector<1x128xf32>
    %12 = vector.broadcast %11 : vector<1x128xf32> to vector<16x128xf32>
    %13 = arith.addf %10, %12 : vector<16x128xf32>
    %cst_11 = arith.constant 0.000000e+00 : f32
    %14 = vector.broadcast %cst_11 : f32 to vector<16x128xf32>
    %15 = arith.maximumf %13, %14 : vector<16x128xf32>
    %c0_12 = arith.constant 0 : index
    %c0_13 = arith.constant 0 : index
    %16 = vector.load %arg6[%c0_12, %c0_13] : memref<128x128xf32, #tpu.memory_space<vmem>>, vector<128x128xf32>
    %cst_14 = arith.constant dense<0.000000e+00> : vector<16x128xf32>
    %17 = tpu.matmul %15, %16, %cst_14 {dimension_numbers = #tpu.dot_dimension_numbers<[1], [0], [0], [1], [0, 0, 1, 1], [], []>} : vector<16x128xf32>, vector<128x128xf32>, vector<16x128xf32> -> vector<16x128xf32>
    %c0_15 = arith.constant 0 : index
    %c0_16 = arith.constant 0 : index
    %18 = vector.load %arg7[%c0_15, %c0_16] : memref<1x128xf32, #tpu.memory_space<vmem>>, vector<1x128xf32>
    %19 = vector.broadcast %18 : vector<1x128xf32> to vector<16x128xf32>
    %20 = arith.addf %17, %19 : vector<16x128xf32>
    %c0_17 = arith.constant 0 : index
    %c0_18 = arith.constant 0 : index
    %21 = vector.load %arg8[%c0_17, %c0_18] : memref<16x128xf32, #tpu.memory_space<vmem>>, vector<16x128xf32>
    tpu.vector_store %arg8[%c0_17, %c0_18], %20 {strides = array<i32>} : memref<16x128xf32, #tpu.memory_space<vmem>>, vector<16x128xf32>,
    return
  }
  func.func @transform_0(%arg0: i32) -> (i32, i32) {
    %c0_i32 = arith.constant 0 : i32
    %c0_i32_0 = arith.constant 0 : i32
    return %arg0, %c0_i32 : i32, i32
  }
  func.func @transform_1(%arg0: i32) -> (i32, i32) {
    %c0_i32 = arith.constant 0 : i32
    %c0_i32_0 = arith.constant 0 : i32
    %c0_i32_1 = arith.constant 0 : i32
    return %c0_i32, %c0_i32_0 : i32, i32
  }
  func.func @transform_2(%arg0: i32) -> (i32, i32) {
    %c0_i32 = arith.constant 0 : i32
    %c0_i32_0 = arith.constant 0 : i32
    %c0_i32_1 = arith.constant 0 : i32
    return %c0_i32, %c0_i32_0 : i32, i32
  }
  func.func @transform_3(%arg0: i32) -> (i32, i32) {
    %c0_i32 = arith.constant 0 : i32
    %c0_i32_0 = arith.constant 0 : i32
    %c0_i32_1 = arith.constant 0 : i32
    return %c0_i32, %c0_i32_0 : i32, i32
  }
  func.func @transform_4(%arg0: i32) -> (i32, i32) {
    %c0_i32 = arith.constant 0 : i32
    %c0_i32_0 = arith.constant 0 : i32
    %c0_i32_1 = arith.constant 0 : i32
    return %c0_i32, %c0_i32_0 : i32, i32
  }
  func.func @transform_5(%arg0: i32) -> (i32, i32) {
    %c0_i32 = arith.constant 0 : i32
    %c0_i32_0 = arith.constant 0 : i32
    %c0_i32_1 = arith.constant 0 : i32
    return %c0_i32, %c0_i32_0 : i32, i32
  }
  func.func @transform_6(%arg0: i32) -> (i32, i32) {
    %c0_i32 = arith.constant 0 : i32
    %c0_i32_0 = arith.constant 0 : i32
    %c0_i32_1 = arith.constant 0 : i32
    return %c0_i32, %c0_i32_0 : i32, i32
  }
  func.func @transform_7(%arg0: i32) -> (i32, i32) {
    %c0_i32 = arith.constant 0 : i32
    %c0_i32_0 = arith.constant 0 : i32
    return %arg0, %c0_i32 : i32, i32
  }
}

</mosaic_0001>

<llo_original>
// kernel: bbox_head_forward.3
$region0: #{bbox_head_forward.3}
  #allocation0 [shape = 'u32[]', space=smem, size = 0x4, offset = 0x4, fixed_abs, tag = 'smem constant byte address 0x4 - core index']
  #allocation1 [shape = 'u32[144,128]{1,0:T(1,128)}', space=vmem, size = 0x12000, scoped, tag = 'internal scratch']
  %s0 = inlined_call_operand.vmem [shape: bf16[16,16], index: 0, kind: input, shape index: {}]
  %s1 = inlined_call_operand.vmem [shape: bf16[16,128], index: 1, kind: input, shape index: {}]
  %s2 = inlined_call_operand.vmem [shape: f32[1,128], index: 2, kind: input, shape index: {}]
  %s3 = inlined_call_operand.vmem [shape: bf16[128,128], index: 3, kind: input, shape index: {}]
  %s4 = inlined_call_operand.vmem [shape: f32[1,128], index: 4, kind: input, shape index: {}]
  %s5 = inlined_call_operand.vmem [shape: f32[128,128], index: 5, kind: input, shape index: {}]
  %s6 = inlined_call_operand.vmem [shape: f32[1,128], index: 6, kind: input, shape index: {}]
  %s7 = inlined_call_operand.vmem [shape: f32[16,128], index: 7, kind: output, shape index: {}]
  %s8 = sld [smem:[#allocation0]]
  $region38: #{bbox_head_forward.3} parent=0
    _
  %s10 = ssub.s32 1, %s8
  %s11 = scalar_select 0, %s10, %s8
  // Predicated region
  $region2: #{bbox_head_forward.3} parent=0 // pred_check
    _
  $region3: #{bbox_head_forward.3} parent=0 // pred_check_branch
    %13 = sbr.rel (0) target = $region5
  $region4: #{bbox_head_forward.3} parent=0 // pred_region
    _
  $region5: #{bbox_head_forward.3} parent=0 // pred_fallthru
    _
  // Predicated region
  $region6: #{bbox_head_forward.3} parent=0 // pred_check
    _
  $region7: #{bbox_head_forward.3} parent=0 // pred_check_branch
    %15 = sbr.rel (0) target = $region9
  $region8: #{bbox_head_forward.3} parent=0 // pred_region
    _
  $region9: #{bbox_head_forward.3} parent=0 // pred_fallthru
    _
  // Predicated region
  $region10: #{bbox_head_forward.3} parent=0 // pred_check
    _
  $region11: #{bbox_head_forward.3} parent=0 // pred_check_branch
    %17 = sbr.rel (0) target = $region13
  $region12: #{bbox_head_forward.3} parent=0 // pred_region
    _
  $region13: #{bbox_head_forward.3} parent=0 // pred_fallthru
    _
  // Predicated region
  $region14: #{bbox_head_forward.3} parent=0 // pred_check
    _
  $region15: #{bbox_head_forward.3} parent=0 // pred_check_branch
    %19 = sbr.rel (0) target = $region17
  $region16: #{bbox_head_forward.3} parent=0 // pred_region
    _
  $region17: #{bbox_head_forward.3} parent=0 // pred_fallthru
    _
  // Predicated region
  $region18: #{bbox_head_forward.3} parent=0 // pred_check
    _
  $region19: #{bbox_head_forward.3} parent=0 // pred_check_branch
    %21 = sbr.rel (0) target = $region21
  $region20: #{bbox_head_forward.3} parent=0 // pred_region
    _
  $region21: #{bbox_head_forward.3} parent=0 // pred_fallthru
    _
  // Predicated region
  $region22: #{bbox_head_forward.3} parent=0 // pred_check
    _
  $region23: #{bbox_head_forward.3} parent=0 // pred_check_branch
    %23 = sbr.rel (0) target = $region25
  $region24: #{bbox_head_forward.3} parent=0 // pred_region
    _
  $region25: #{bbox_head_forward.3} parent=0 // pred_fallthru
    _
  // Predicated region
  $region26: #{bbox_head_forward.3} parent=0 // pred_check
    _
  $region27: #{bbox_head_forward.3} parent=0 // pred_check_branch
    %25 = sbr.rel (0) target = $region29
  $region28: #{bbox_head_forward.3} parent=0 // pred_region
    _
  $region29: #{bbox_head_forward.3} parent=0 // pred_fallthru
    _
  %v27 = vld [vmem:[%s0] sm:$0xf]
  %v28 = vld [vmem:[%s0 + $0x4] sm:$0xf]
  %v29 = vld [vmem:[%s1] sm:$0xf]
  %v30 = vld [vmem:[%s1 + $0x4] sm:$0xf]
  %v31 = vld [vmem:[%s2] sm:$0x1]
  %v33 = vlaneseq
  %v34 = vshrl.u32 %v33, 7
  %v35 = vsub.s32 0, %v34
  %v36 = vrot.slane %v31, %v35
  %v40 = vunpack.c.l.b16 %v27
  %v41 = vunpack.c.l.b16 %v28
  %v42 = vpack.c.b16 %v41, %v40
  %v45 = vunpack.c.l.b16 %v29
  %v46 = vunpack.c.l.b16 %v30
  %v47 = vpack.c.b16 %v46, %v45
  %vm49 = vcmask 130048
  %v51 = vsel %vm49, %v42, 0
  %53 = vmatprep.subr.bf16.mxu0 0
  %54 = vmatpush1.bf16.msra.mxu0 %v47
  %55 = vmatprep.subr.bf16.mxu0 0
  %56 = vmatpush1.bf16.msra.mxu0 0
  %57 = vmatprep.subr.bf16.mxu0 0
  %58 = vmatpush1.bf16.msra.mxu0 0
  %59 = vmatprep.subr.bf16.mxu0 0
  %60 = vmatpush1.bf16.msra.mxu0 0
  %61 = vmatprep.subr.bf16.mxu0 0
  %62 = vmatpush1.bf16.msra.mxu0 0
  %63 = vmatprep.subr.bf16.mxu0 0
  %64 = vmatpush1.bf16.msra.mxu0 0
  %65 = vmatprep.subr.bf16.mxu0 0
  %66 = vmatpush1.bf16.msra.mxu0 0
  %67 = vmatprep.subr.bf16.mxu0 0
  %68 = vmatpush1.bf16.msra.mxu0 0
  %69 = vmatprep.subr.bf16.mxu0 0
  %70 = vmatpush1.bf16.msra.mxu0 0
  %71 = vmatprep.subr.bf16.mxu0 0
  %72 = vmatpush1.bf16.msra.mxu0 0
  %73 = vmatprep.subr.bf16.mxu0 0
  %74 = vmatpush1.bf16.msra.mxu0 0
  %75 = vmatprep.subr.bf16.mxu0 0
  %76 = vmatpush1.bf16.msra.mxu0 0
  %77 = vmatprep.subr.bf16.mxu0 0
  %78 = vmatpush1.bf16.msra.mxu0 0
  %79 = vmatprep.subr.bf16.mxu0 0
  %80 = vmatpush1.bf16.msra.mxu0 0
  %81 = vmatprep.subr.bf16.mxu0 0
  %82 = vmatpush1.bf16.msra.mxu0 0
  %83 = vmatprep.subr.bf16.mxu0 0
  %84 = vmatpush1.bf16.msra.mxu0 0
  %85 = vmatprep.mubr.bf16.mxu0 0
  %86 = vmatmul.mubr.bf16.gmra.mrb[0].mxu0 %v51
  %v87 = vpop.f32.mrb[0].mxu0
  %v88 = vadd.f32 %v36, %v87
  %v89 = vpop.f32.mrb[0].mxu0
  %v90 = vpop.f32.mrb[0].mxu0
  %v91 = vadd.f32 %v36, %v90
  %v92 = vpop.f32.mrb[0].mxu0
  %93 = vdwg.mxu0
  %v94 = vmax.f32 %v88, 0.0
  %v95 = vmax.f32 %v91, 0.0
  %v96 = vpack.c.bf16 %v95, %v94
  %v97 = vld [vmem:[%s3] sm:$0xf]
  %v98 = vld [vmem:[%s3 + $0x4] sm:$0xf]
  %v99 = vld [vmem:[%s3 + $0x8] sm:$0xf]
  %v100 = vld [vmem:[%s3 + $0xc] sm:$0xf]
  %v101 = vld [vmem:[%s3 + $0x10] sm:$0xf]
  %v102 = vld [vmem:[%s3 + $0x14] sm:$0xf]
  %v103 = vld [vmem:[%s3 + $0x18] sm:$0xf]
  %v104 = vld [vmem:[%s3 + $0x1c] sm:$0xf]
  %v105 = vld [vmem:[%s3 + $0x20] sm:$0xf]
  %v106 = vld [vmem:[%s3 + $0x24] sm:$0xf]
  %v107 = vld [vmem:[%s3 + $0x28] sm:$0xf]
  %v108 = vld [vmem:[%s3 + $0x2c] sm:$0xf]
  %v109 = vld [vmem:[%s3 + $0x30] sm:$0xf]
  %v110 = vld [vmem:[%s3 + $0x34] sm:$0xf]
  %v111 = vld [vmem:[%s3 + $0x38] sm:$0xf]
  %v112 = vld [vmem:[%s3 + $0x3c] sm:$0xf]
  %v113 = vld [vmem:[%s4] sm:$0x1]
  %v115 = vlaneseq
  %v116 = vshrl.u32 %v115, 7
  %v117 = vsub.s32 0, %v116
  %v118 = vrot.slane %v113, %v117
  %v136 = vunpack.c.l.b16 %v97
  %v137 = vunpack.c.l.b16 %v98
  %v138 = vunpack.c.l.b16 %v99
  %v139 = vunpack.c.l.b16 %v100
  %v140 = vunpack.c.l.b16 %v101
  %v141 = vunpack.c.l.b16 %v102
  %v142 = vunpack.c.l.b16 %v103
  %v143 = vunpack.c.l.b16 %v104
  %v144 = vunpack.c.l.b16 %v105
  %v145 = vunpack.c.l.b16 %v106
  %v146 = vunpack.c.l.b16 %v107
  %v147 = vunpack.c.l.b16 %v108
  %v148 = vunpack.c.l.b16 %v109
  %v149 = vunpack.c.l.b16 %v110
  %v150 = vunpack.c.l.b16 %v111
  %v151 = vunpack.c.l.b16 %v112
  %v152 = vpack.c.b16 %v137, %v136
  %v153 = vpack.c.b16 %v139, %v138
  %v154 = vpack.c.b16 %v141, %v140
  %v155 = vpack.c.b16 %v143, %v142
  %v156 = vpack.c.b16 %v145, %v144
  %v157 = vpack.c.b16 %v147, %v146
  %v158 = vpack.c.b16 %v149, %v148
  %v159 = vpack.c.b16 %v151, %v150
  %168 = vmatprep.subr.bf16.mxu0 0
  %169 = vmatpush1.bf16.msra.mxu0 %v152
  %170 = vmatprep.subr.bf16.mxu0 0
  %171 = vmatpush1.bf16.msra.mxu0 %v153
  %172 = vmatprep.subr.bf16.mxu0 0
  %173 = vmatpush1.bf16.msra.mxu0 %v154
  %174 = vmatprep.subr.bf16.mxu0 0
  %175 = vmatpush1.bf16.msra.mxu0 %v155
  %176 = vmatprep.subr.bf16.mxu0 0
  %177 = vmatpush1.bf16.msra.mxu0 %v156
  %178 = vmatprep.subr.bf16.mxu0 0
  %179 = vmatpush1.bf16.msra.mxu0 %v157
  %180 = vmatprep.subr.bf16.mxu0 0
  %181 = vmatpush1.bf16.msra.mxu0 %v158
  %182 = vmatprep.subr.bf16.mxu0 0
  %183 = vmatpush1.bf16.msra.mxu0 %v159
  %184 = vmatprep.subr.bf16.mxu0 0
  %185 = vmatpush1.bf16.msra.mxu0 0
  %186 = vmatprep.subr.bf16.mxu0 0
  %187 = vmatpush1.bf16.msra.mxu0 0
  %188 = vmatprep.subr.bf16.mxu0 0
  %189 = vmatpush1.bf16.msra.mxu0 0
  %190 = vmatprep.subr.bf16.mxu0 0
  %191 = vmatpush1.bf16.msra.mxu0 0
  %192 = vmatprep.subr.bf16.mxu0 0
  %193 = vmatpush1.bf16.msra.mxu0 0
  %194 = vmatprep.subr.bf16.mxu0 0
  %195 = vmatpush1.bf16.msra.mxu0 0
  %196 = vmatprep.subr.bf16.mxu0 0
  %197 = vmatpush1.bf16.msra.mxu0 0
  %198 = vmatprep.subr.bf16.mxu0 0
  %199 = vmatpush1.bf16.msra.mxu0 0
  %200 = vmatprep.mubr.bf16.mxu0 0
  %201 = vmatmul.mubr.bf16.gmra.mrb[0].mxu0 %v96
  %v202 = vpop.f32.mrb[0].mxu0
  %v203 = vadd.f32 %v118, %v202
  %v204 = vpop.f32.mrb[0].mxu0
  %v205 = vpop.f32.mrb[0].mxu0
  %v206 = vadd.f32 %v118, %v205
  %v207 = vpop.f32.mrb[0].mxu0
  %208 = vdwg.mxu0
  %v209 = vmax.f32 %v203, 0.0
  %v210 = vmax.f32 %v206, 0.0
  %v211 = vld [vmem:[%s5] sm:$0xff]
  %v212 = vld [vmem:[%s5 + $0x8] sm:$0xff]
  %v213 = vld [vmem:[%s5 + $0x10] sm:$0xff]
  %v214 = vld [vmem:[%s5 + $0x18] sm:$0xff]
  %v215 = vld [vmem:[%s5 + $0x20] sm:$0xff]
  %v216 = vld [vmem:[%s5 + $0x28] sm:$0xff]
  %v217 = vld [vmem:[%s5 + $0x30] sm:$0xff]
  %v218 = vld [vmem:[%s5 + $0x38] sm:$0xff]
  %v219 = vld [vmem:[%s5 + $0x40] sm:$0xff]
  %v220 = vld [vmem:[%s5 + $0x48] sm:$0xff]
  %v221 = vld [vmem:[%s5 + $0x50] sm:$0xff]
  %v222 = vld [vmem:[%s5 + $0x58] sm:$0xff]
  %v223 = vld [vmem:[%s5 + $0x60] sm:$0xff]
  %v224 = vld [vmem:[%s5 + $0x68] sm:$0xff]
  %v225 = vld [vmem:[%s5 + $0x70] sm:$0xff]
  %v226 = vld [vmem:[%s5 + $0x78] sm:$0xff]
  %v227 = vld [vmem:[%s6] sm:$0x1]
  %v229 = vlaneseq
  %v230 = vshrl.u32 %v229, 7
  %v231 = vsub.s32 0, %v230
  %v232 = vrot.slane %v227, %v231
  %234 = vmatprep.subr.mxu0 0.0
  %235 = vmatpush1.msra.mxu0 %v211
  %236 = vmatprep.subr.mxu0 0.0
  %237 = vmatpush1.msra.mxu0 %v212
  %238 = vmatprep.subr.mxu0 0.0
  %239 = vmatpush1.msra.mxu0 %v213
  %240 = vmatprep.subr.mxu0 0.0
  %241 = vmatpush1.msra.mxu0 %v214
  %242 = vmatprep.subr.mxu0 0.0
  %243 = vmatpush1.msra.mxu0 %v215
  %244 = vmatprep.subr.mxu0 0.0
  %245 = vmatpush1.msra.mxu0 %v216
  %246 = vmatprep.subr.mxu0 0.0
  %247 = vmatpush1.msra.mxu0 %v217
  %248 = vmatprep.subr.mxu0 0.0
  %249 = vmatpush1.msra.mxu0 %v218
  %250 = vmatprep.subr.mxu0 0.0
  %251 = vmatpush1.msra.mxu0 %v219
  %252 = vmatprep.subr.mxu0 0.0
  %253 = vmatpush1.msra.mxu0 %v220
  %254 = vmatprep.subr.mxu0 0.0
  %255 = vmatpush1.msra.mxu0 %v221
  %256 = vmatprep.subr.mxu0 0.0
  %257 = vmatpush1.msra.mxu0 %v222
  %258 = vmatprep.subr.mxu0 0.0
  %259 = vmatpush1.msra.mxu0 %v223
  %260 = vmatprep.subr.mxu0 0.0
  %261 = vmatpush1.msra.mxu0 %v224
  %262 = vmatprep.subr.mxu0 0.0
  %263 = vmatpush1.msra.mxu0 %v225
  %264 = vmatprep.subr.mxu0 0.0
  %265 = vmatpush1.msra.mxu0 %v226
  %266 = vmatprep.subr.mxu0 0.0
  %267 = vmatpush1.msra.mxu0 0.0
  %268 = vmatprep.subr.mxu0 0.0
  %269 = vmatpush1.msra.mxu0 0.0
  %270 = vmatprep.subr.mxu0 0.0
  %271 = vmatpush1.msra.mxu0 0.0
  %272 = vmatprep.subr.mxu0 0.0
  %273 = vmatpush1.msra.mxu0 0.0
  %274 = vmatprep.subr.mxu0 0.0
  %275 = vmatpush1.msra.mxu0 0.0
  %276 = vmatprep.subr.mxu0 0.0
  %277 = vmatpush1.msra.mxu0 0.0
  %278 = vmatprep.subr.mxu0 0.0
  %279 = vmatpush1.msra.mxu0 0.0
  %280 = vmatprep.subr.mxu0 0.0
  %281 = vmatpush1.msra.mxu0 0.0
  %282 = vmatprep.subr.mxu0 0.0
  %283 = vmatpush1.msra.mxu0 0.0
  %284 = vmatprep.subr.mxu0 0.0
  %285 = vmatpush1.msra.mxu0 0.0
  %286 = vmatprep.subr.mxu0 0.0
  %287 = vmatpush1.msra.mxu0 0.0
  %288 = vmatprep.subr.mxu0 0.0
  %289 = vmatpush1.msra.mxu0 0.0
  %290 = vmatprep.subr.mxu0 0.0
  %291 = vmatpush1.msra.mxu0 0.0
  %292 = vmatprep.subr.mxu0 0.0
  %293 = vmatpush1.msra.mxu0 0.0
  %294 = vmatprep.subr.mxu0 0.0
  %295 = vmatpush1.msra.mxu0 0.0
  %296 = vmatprep.subr.mxu0 0.0
  %297 = vmatpush1.msra.mxu0 0.0
  %298 = vmatprep.mubr.f32.mxu0 0.0
  %299 = vmatmul.mubr.f32.gmra.mrb[0].mxu0 %v209
  %v300 = vpop.f32.mrb[0].mxu0
  %v301 = vadd.f32 %v232, %v300
  %v302 = vpop.f32.mrb[0].mxu0
  %303 = vmatprep.mubr.f32.mxu0 0.0
  %304 = vmatmul.mubr.f32.gmra.mrb[0].mxu0 %v210
  %v305 = vpop.f32.mrb[0].mxu0
  %v306 = vadd.f32 %v232, %v305
  %v307 = vpop.f32.mrb[0].mxu0
  %308 = vdwg.mxu0
  %309 = vst [vmem:[%s7] sm:$0xff] %v301
  %310 = vst [vmem:[%s7 + $0x8] sm:$0xff] %v306
  // Predicated region
  $region30: #{bbox_head_forward.3} parent=0 // pred_check
    _
  $region31: #{bbox_head_forward.3} parent=0 // pred_check_branch
    %312 = sbr.rel (0) target = $region33
  $region32: #{bbox_head_forward.3} parent=0 // pred_region
    _
  $region33: #{bbox_head_forward.3} parent=0 // pred_fallthru
    _
  // Predicated region
  $region34: #{bbox_head_forward.3} parent=0 // pred_check
    _
  $region35: #{bbox_head_forward.3} parent=0 // pred_check_branch
    %314 = sbr.rel (0) target = $region37
  $region36: #{bbox_head_forward.3} parent=0 // pred_region
    _
  $region37: #{bbox_head_forward.3} parent=0 // pred_fallthru
    _

// kernel: bbox_head_forward.2
$region0: #{bbox_head_forward.2}
  #allocation0 [shape = 'u32[]', space=smem, size = 0x4, offset = 0x4, fixed_abs, tag = 'smem constant byte address 0x4 - core index']
  #allocation1 [shape = 'u32[144,128]{1,0:T(1,128)}', space=vmem, size = 0x12000, scoped, tag = 'internal scratch']
  #allocation2 [shape = 's32[1]{0}', space=sflag, size = 0x4, scoped, tag = 'scoped memory for bbox_head_forward.2']
  #allocation3 [shape = 'u8[4096]{0}', space=smem, size = 0x1000, scoped, tag = 'prefetched SMEM operand 0']
  %s0 = inlined_call_operand.vmem [shape: s32[8,9], index: 0, kind: input, shape index: {}]
  %s1 = inlined_call_operand.vmem [shape: f32[2,16,16,4], index: 1, kind: input, shape index: {}]
  %s2 = inlined_call_operand.vmem [shape: f32[8,4,4], index: 2, kind: output, shape index: {}]
  %s3 = sld [smem:[#allocation0]]
  $region37: #{bbox_head_forward.2} parent=0
    _
  %s5 = ssub.s32 1, %s3
  %s6 = scalar_select 0, %s5, %s3
  %s7 = sshll.u32 %s0, 4
  %s8 = int_to_ptr.vmem [resolvable:$true] %s7
  %10 = dma.vmem_to_smem %s8, 128, [#allocation3], [#allocation2]
  %11 = dma.done [#allocation2], 128
  %12 = sfence
  loop: start=0, step=1, limit=10
  $region2: #{bbox_head_forward.2} parent=0 // loop_pre_header
    _
  $region3: #{bbox_head_forward.2} parent=0 // loop_header
    %s14 = sphi 0, %s18
    %p15 = scmp.ge.s32.totalorder %s14, 10
    %s28 = sphi 0, %s30
    %s31 = sphi 0, %s28
    %s32 = sphi 0, %s31
    %s48 = sphi 0, %s32
    %s54 = sphi 0, %s56
    %s57 = sphi 0, %s54
    %s58 = sphi 0, %s57
    %s74 = sphi 0, %s58
  $region4: #{bbox_head_forward.2} parent=0 // loop_header_branch
    %17 = sbr.rel (%p15) target = $region8
  $region5: #{bbox_head_forward.2} parent=0 // loop_body
    %s19 = ssub.s32 %s14, 1
    %s20 = ssub.s32 %s14, 2
    %s21 = sadd.s32 %s14, 1
    %s22 = smul.u32 %s14, 128
    %s23 = sld [smem:[#allocation3 + %s22]]
    %s24 = smul.u32 %s21, 128
    %s25 = sld [smem:[#allocation3 + %s24]]
    %s26 = ssub.s32 %s23, %s25
    %p27 = scmp.eq.s32.totalorder %s26, 0
    %s29 = sadd.s32 %s28, 1
    %s30 = scalar_select %p27, %s28, %s29
    %p33 = pneg %p27
    %p34 = scmp.eq.s32.totalorder %s14, 7
    %p35 = por %p33, %p34
    %p36 = scmp.ne.s32.totalorder %s28, %s31
    %p37 = scmp.eq.s32.totalorder %s14, 0
    %p38 = por %p36, %p37
    %p39 = scmp.ne.s32.totalorder %s28, %s31
    %p40 = scmp.eq.s32.totalorder %s19, 7
    %p41 = por %p39, %p40
    %p42 = scmp.ne.s32.totalorder %s31, %s32
    %p43 = scmp.eq.s32.totalorder %s19, 0
    %p44 = por %p42, %p43
    %p45 = scmp.ne.s32.totalorder %s31, %s32
    %p46 = scmp.eq.s32.totalorder %s20, 7
    %p47 = por %p45, %p46
    %p49 = scmp.ne.s32.totalorder %s32, %s48
    %p50 = scmp.eq.s32.totalorder %s20, 0
    %p51 = por %p49, %p50
    %s52 = ssub.s32 %s14, %s21
    %p53 = scmp.eq.s32.totalorder %s52, 0
    %s55 = sadd.s32 %s54, 1
    %s56 = scalar_select %p53, %s54, %s55
    %p59 = pneg %p53
    %p60 = scmp.eq.s32.totalorder %s14, 7
    %p61 = por %p59, %p60
    %p62 = scmp.ne.s32.totalorder %s54, %s57
    %p63 = scmp.eq.s32.totalorder %s14, 0
    %p64 = por %p62, %p63
    %p65 = scmp.ne.s32.totalorder %s54, %s57
    %p66 = scmp.eq.s32.totalorder %s19, 7
    %p67 = por %p65, %p66
    %p68 = scmp.ne.s32.totalorder %s57, %s58
    %p69 = scmp.eq.s32.totalorder %s19, 0
    %p70 = por %p68, %p69
    %p71 = scmp.ne.s32.totalorder %s57, %s58
    %p72 = scmp.eq.s32.totalorder %s20, 7
    %p73 = por %p71, %p72
    %p75 = scmp.ne.s32.totalorder %s58, %s74
    %p76 = scmp.eq.s32.totalorder %s20, 0
    %p77 = por %p75, %p76
    %p78 = scmp.le.s32.totalorder 1, %s14
    %p79 = scmp.lt.s32.totalorder %s14, 9
    %p80 = pnand %p78, %p79
    %p81 = pneg %p80
    // Predicated region
    $region9: #{bbox_head_forward.2} parent=5 // pred_check
      _
    $region10: #{bbox_head_forward.2} parent=5 // pred_check_branch
      %83 = sbr.rel (%p80) target = $region12
    $region11: #{bbox_head_forward.2} parent=5 // pred_region
      %s84 = ssub.s32 %s14, 1
    $region12: #{bbox_head_forward.2} parent=5 // pred_fallthru
      _
    %p85 = scmp.lt.s32.totalorder %s14, 8
    // Predicated region
    $region13: #{bbox_head_forward.2} parent=5 // pred_check
      %p86 = pneg %p85
    $region14: #{bbox_head_forward.2} parent=5 // pred_check_branch
      %88 = sbr.rel (%p86) target = $region16
    $region15: #{bbox_head_forward.2} parent=5 // pred_region
      // Predicated region
      $region17: #{bbox_head_forward.2} parent=15 // pred_check
        %p89 = pneg %p38
      $region18: #{bbox_head_forward.2} parent=15 // pred_check_branch
        %91 = sbr.rel (%p89) target = $region20
      $region19: #{bbox_head_forward.2} parent=15 // pred_region
        %s92 = smul.u32 %s14, 128
        %s93 = sld [smem:[#allocation3 + %s92]]
        %p94 = scmp.lt.s32.totalorder %s93, 1
        %s95 = scalar_select %p94, %s93, 1
        %s96 = smul.addr %s95, 32
        %s97 = smul.addr %s96, 8
        %s98 = scalar_lea.vmem %s1, %s97
        %s99 = smul.u32 %s14, 128
        %s100 = sld [smem:[#allocation3 + %s99]]
      $region20: #{bbox_head_forward.2} parent=15 // pred_fallthru
        _
    $region16: #{bbox_head_forward.2} parent=5 // pred_fallthru
      _
    %p101 = scmp.le.s32.totalorder 1, %s14
    %p102 = scmp.lt.s32.totalorder %s14, 9
    %p103 = pnand %p101, %p102
    %p104 = pneg %p103
    // Predicated region
    $region21: #{bbox_head_forward.2} parent=5 // pred_check
      _
    $region22: #{bbox_head_forward.2} parent=5 // pred_check_branch
      %106 = sbr.rel (%p103) target = $region24
    $region23: #{bbox_head_forward.2} parent=5 // pred_region
      %s107 = ssub.s32 %s14, 1
      %s108 = smul.u32 %s19, 128
      %s109 = sld [smem:[#allocation3 + %s108]]
      %p110 = scmp.lt.s32.totalorder %s109, 1
      %s111 = scalar_select %p110, %s109, 1
      %s112 = smul.addr %s111, 32
      %s113 = smul.addr %s112, 8
      %s114 = scalar_lea.vmem %s1, %s113
      %p115 = pneg %p44
      %p116 = pneg %p41
      %p117 = pneg %p70
      %p118 = pneg %p67
      %p119 = scmp.lt.s32.totalorder %s19, 7
      %s120 = scalar_select %p119, %s19, 7
      %s121 = smul.addr %s120, 4
      %s122 = scalar_lea.vmem %s2, %s121
      %s123 = smul.u32 %s19, 128
      %s124 = sld [smem:[#allocation3 + %s123]]
      %p125 = scmp.lt.s32.totalorder %s124, 1
      %s126 = scalar_select %p125, %s124, 1
      %s127 = smul.addr %s126, 32
      %s128 = smul.addr %s127, 8
      %s129 = scalar_lea.vmem %s1, %s128
      %s130 = smul.u32 %s19, 128
      %s131 = sld [smem:[#allocation3 + %s130]]
      %p132 = scmp.lt.s32.totalorder %s19, 7
      %s133 = scalar_select %p132, %s19, 7
      %s134 = smul.addr %s133, 4
      %s135 = scalar_lea.vmem %s2, %s134
      %v136 = vld [vmem:[%s129] sm:$0xff]
      %v137 = vld [vmem:[%s129 + $0x8] sm:$0xff]
      %v138 = vld [vmem:[%s129 + $0x10] sm:$0xff]
      %v139 = vld [vmem:[%s129 + $0x18] sm:$0xff]
      %v140 = vld [vmem:[%s129 + $0x20] sm:$0xff]
      %v141 = vld [vmem:[%s129 + $0x28] sm:$0xff]
      %v142 = vld [vmem:[%s129 + $0x30] sm:$0xff]
      %v143 = vld [vmem:[%s129 + $0x38] sm:$0xff]
      %v144 = vld [vmem:[%s129 + $0x40] sm:$0xff]
      %v145 = vld [vmem:[%s129 + $0x48] sm:$0xff]
      %v146 = vld [vmem:[%s129 + $0x50] sm:$0xff]
      %v147 = vld [vmem:[%s129 + $0x58] sm:$0xff]
      %v148 = vld [vmem:[%s129 + $0x60] sm:$0xff]
      %v149 = vld [vmem:[%s129 + $0x68] sm:$0xff]
      %v150 = vld [vmem:[%s129 + $0x70] sm:$0xff]
      %v151 = vld [vmem:[%s129 + $0x78] sm:$0xff]
      %v152 = vld [vmem:[%s129 + $0x80] sm:$0xff]
      %v153 = vld [vmem:[%s129 + $0x88] sm:$0xff]
      %v154 = vld [vmem:[%s129 + $0x90] sm:$0xff]
      %v155 = vld [vmem:[%s129 + $0x98] sm:$0xff]
      %v156 = vld [vmem:[%s129 + $0xa0] sm:$0xff]
      %v157 = vld [vmem:[%s129 + $0xa8] sm:$0xff]
      %v158 = vld [vmem:[%s129 + $0xb0] sm:$0xff]
      %v159 = vld [vmem:[%s129 + $0xb8] sm:$0xff]
      %v160 = vld [vmem:[%s129 + $0xc0] sm:$0xff]
      %v161 = vld [vmem:[%s129 + $0xc8] sm:$0xff]
      %v162 = vld [vmem:[%s129 + $0xd0] sm:$0xff]
      %v163 = vld [vmem:[%s129 + $0xd8] sm:$0xff]
      %v164 = vld [vmem:[%s129 + $0xe0] sm:$0xff]
      %v165 = vld [vmem:[%s129 + $0xe8] sm:$0xff]
      %v166 = vld [vmem:[%s129 + $0xf0] sm:$0xff]
      %v167 = vld [vmem:[%s129 + $0xf8] sm:$0xff]
      %v168 = vlaneseq
      %v169 = vshrl.u32 %v168, 7
      %v170 = vadd.s32 %v169, 8
      %s171 = smul.u32 %s19, 128
      %s172 = sadd.s32 %s171, 1
      %s173 = sld [smem:[#allocation3 + %s172]]
      %s174 = sadd.s32 %s171, 3
      %s175 = sld [smem:[#allocation3 + %s174]]
      %s176 = sadd.s32 %s171, 5
      %s177 = sld [smem:[#allocation3 + %s176]]
      %s178 = sadd.s32 %s171, 7
      %s179 = sld [smem:[#allocation3 + %s178]]
      %v180 = vstv %s173
      %vm181 = vcmp.le.s32.totalorder %v180, 0
      %vm182 = vcmp.le.s32.totalorder %v180, 1
      %vm183 = vcmp.le.s32.totalorder %v180, 2
      %vm184 = vcmp.le.s32.totalorder %v180, 3
      %vm185 = vcmp.le.s32.totalorder %v180, 4
      %vm186 = vcmp.le.s32.totalorder %v180, 5
      %vm187 = vcmp.le.s32.totalorder %v180, 6
      %vm188 = vcmp.le.s32.totalorder %v180, 7
      %vm189 = vcmp.le.s32.totalorder %v180, 8
      %vm190 = vcmp.le.s32.totalorder %v180, 9
      %vm191 = vcmp.le.s32.totalorder %v180, 10
      %vm192 = vcmp.le.s32.totalorder %v180, 11
      %vm193 = vcmp.le.s32.totalorder %v180, 12
      %vm194 = vcmp.le.s32.totalorder %v180, 13
      %vm195 = vcmp.le.s32.totalorder %v180, 14
      %vm196 = vcmp.le.s32.totalorder %v180, 15
      %v197 = vstv %s175
      %vm198 = vcmp.gt.s32.totalorder %v197, 0
      %vm199 = vcmp.gt.s32.totalorder %v197, 1
      %vm200 = vcmp.gt.s32.totalorder %v197, 2
      %vm201 = vcmp.gt.s32.totalorder %v197, 3
      %vm202 = vcmp.gt.s32.totalorder %v197, 4
      %vm203 = vcmp.gt.s32.totalorder %v197, 5
      %vm204 = vcmp.gt.s32.totalorder %v197, 6
      %vm205 = vcmp.gt.s32.totalorder %v197, 7
      %vm206 = vcmp.gt.s32.totalorder %v197, 8
      %vm207 = vcmp.gt.s32.totalorder %v197, 9
      %vm208 = vcmp.gt.s32.totalorder %v197, 10
      %vm209 = vcmp.gt.s32.totalorder %v197, 11
      %vm210 = vcmp.gt.s32.totalorder %v197, 12
      %vm211 = vcmp.gt.s32.totalorder %v197, 13
      %vm212 = vcmp.gt.s32.totalorder %v197, 14
      %vm213 = vcmp.gt.s32.totalorder %v197, 15
      %vm214 = vmand %vm181, %vm198
      %vm215 = vmand %vm182, %vm199
      %vm216 = vmand %vm183, %vm200
      %vm217 = vmand %vm184, %vm201
      %vm218 = vmand %vm185, %vm202
      %vm219 = vmand %vm186, %vm203
      %vm220 = vmand %vm187, %vm204
      %vm221 = vmand %vm188, %vm205
      %vm222 = vmand %vm189, %vm206
      %vm223 = vmand %vm190, %vm207
      %vm224 = vmand %vm191, %vm208
      %vm225 = vmand %vm192, %vm209
      %vm226 = vmand %vm193, %vm210
      %vm227 = vmand %vm194, %vm211
      %vm228 = vmand %vm195, %vm212
      %vm229 = vmand %vm196, %vm213
      %v230 = vstv %s177
      %vm231 = vcmp.ge.s32.totalorder %v169, %v230
      %vm232 = vcmp.ge.s32.totalorder %v170, %v230
      %vm233 = vmand %vm214, %vm231
      %vm234 = vmand %vm214, %vm232
      %vm235 = vmand %vm215, %vm231
      %vm236 = vmand %vm215, %vm232
      %vm237 = vmand %vm216, %vm231
      %vm238 = vmand %vm216, %vm232
      %vm239 = vmand %vm217, %vm231
      %vm240 = vmand %vm217, %vm232
      %vm241 = vmand %vm218, %vm231
      %vm242 = vmand %vm218, %vm232
      %vm243 = vmand %vm219, %vm231
      %vm244 = vmand %vm219, %vm232
      %vm245 = vmand %vm220, %vm231
      %vm246 = vmand %vm220, %vm232
      %vm247 = vmand %vm221, %vm231
      %vm248 = vmand %vm221, %vm232
      %vm249 = vmand %vm222, %vm231
      %vm250 = vmand %vm222, %vm232
      %vm251 = vmand %vm223, %vm231
      %vm252 = vmand %vm223, %vm232
      %vm253 = vmand %vm224, %vm231
      %vm254 = vmand %vm224, %vm232
      %vm255 = vmand %vm225, %vm231
      %vm256 = vmand %vm225, %vm232
      %vm257 = vmand %vm226, %vm231
      %vm258 = vmand %vm226, %vm232
      %vm259 = vmand %vm227, %vm231
      %vm260 = vmand %vm227, %vm232
      %vm261 = vmand %vm228, %vm231
      %vm262 = vmand %vm228, %vm232
      %vm263 = vmand %vm229, %vm231
      %vm264 = vmand %vm229, %vm232
      %v265 = vstv %s179
      %vm266 = vcmp.lt.s32.totalorder %v169, %v265
      %vm267 = vcmp.lt.s32.totalorder %v170, %v265
      %vm268 = vmand %vm233, %vm266
      %vm269 = vmand %vm234, %vm267
      %vm270 = vmand %vm235, %vm266
      %vm271 = vmand %vm236, %vm267
      %vm272 = vmand %vm237, %vm266
      %vm273 = vmand %vm238, %vm267
      %vm274 = vmand %vm239, %vm266
      %vm275 = vmand %vm240, %vm267
      %vm276 = vmand %vm241, %vm266
      %vm277 = vmand %vm242, %vm267
      %vm278 = vmand %vm243, %vm266
      %vm279 = vmand %vm244, %vm267
      %vm280 = vmand %vm245, %vm266
      %vm281 = vmand %vm246, %vm267
      %vm282 = vmand %vm247, %vm266
      %vm283 = vmand %vm248, %vm267
      %vm284 = vmand %vm249, %vm266
      %vm285 = vmand %vm250, %vm267
      %vm286 = vmand %vm251, %vm266
      %vm287 = vmand %vm252, %vm267
      %vm288 = vmand %vm253, %vm266
      %vm289 = vmand %vm254, %vm267
      %vm290 = vmand %vm255, %vm266
      %vm291 = vmand %vm256, %vm267
      %vm292 = vmand %vm257, %vm266
      %vm293 = vmand %vm258, %vm267
      %vm294 = vmand %vm259, %vm266
      %vm295 = vmand %vm260, %vm267
      %vm296 = vmand %vm261, %vm266
      %vm297 = vmand %vm262, %vm267
      %vm298 = vmand %vm263, %vm266
      %vm299 = vmand %vm264, %vm267
      %v300 = vsel %vm268, 1, 0
      %v301 = vsel %vm269, 1, 0
      %v302 = vsel %vm270, 1, 0
      %v303 = vsel %vm271, 1, 0
      %v304 = vsel %vm272, 1, 0
      %v305 = vsel %vm273, 1, 0
      %v306 = vsel %vm274, 1, 0
      %v307 = vsel %vm275, 1, 0
      %v308 = vsel %vm276, 1, 0
      %v309 = vsel %vm277, 1, 0
      %v310 = vsel %vm278, 1, 0
      %v311 = vsel %vm279, 1, 0
      %v312 = vsel %vm280, 1, 0
      %v313 = vsel %vm281, 1, 0
      %v314 = vsel %vm282, 1, 0
      %v315 = vsel %vm283, 1, 0
      %v316 = vsel %vm284, 1, 0
      %v317 = vsel %vm285, 1, 0
      %v318 = vsel %vm286, 1, 0
      %v319 = vsel %vm287, 1, 0
      %v320 = vsel %vm288, 1, 0
      %v321 = vsel %vm289, 1, 0
      %v322 = vsel %vm290, 1, 0
      %v323 = vsel %vm291, 1, 0
      %v324 = vsel %vm292, 1, 0
      %v325 = vsel %vm293, 1, 0
      %v326 = vsel %vm294, 1, 0
      %v327 = vsel %vm295, 1, 0
      %v328 = vsel %vm296, 1, 0
      %v329 = vsel %vm297, 1, 0
      %v330 = vsel %vm298, 1, 0
      %v331 = vsel %vm299, 1, 0
      %vm332 = vcmp.eq.s32.totalorder %v300, 1
      %vm333 = vcmp.eq.s32.totalorder %v301, 1
      %vm334 = vcmp.eq.s32.totalorder %v302, 1
      %vm335 = vcmp.eq.s32.totalorder %v303, 1
      %vm336 = vcmp.eq.s32.totalorder %v304, 1
      %vm337 = vcmp.eq.s32.totalorder %v305, 1
      %vm338 = vcmp.eq.s32.totalorder %v306, 1
      %vm339 = vcmp.eq.s32.totalorder %v307, 1
      %vm340 = vcmp.eq.s32.totalorder %v308, 1
      %vm341 = vcmp.eq.s32.totalorder %v309, 1
      %vm342 = vcmp.eq.s32.totalorder %v310, 1
      %vm343 = vcmp.eq.s32.totalorder %v311, 1
      %vm344 = vcmp.eq.s32.totalorder %v312, 1
      %vm345 = vcmp.eq.s32.totalorder %v313, 1
      %vm346 = vcmp.eq.s32.totalorder %v314, 1
      %vm347 = vcmp.eq.s32.totalorder %v315, 1
      %vm348 = vcmp.eq.s32.totalorder %v316, 1
      %vm349 = vcmp.eq.s32.totalorder %v317, 1
      %vm350 = vcmp.eq.s32.totalorder %v318, 1
      %vm351 = vcmp.eq.s32.totalorder %v319, 1
      %vm352 = vcmp.eq.s32.totalorder %v320, 1
      %vm353 = vcmp.eq.s32.totalorder %v321, 1
      %vm354 = vcmp.eq.s32.totalorder %v322, 1
      %vm355 = vcmp.eq.s32.totalorder %v323, 1
      %vm356 = vcmp.eq.s32.totalorder %v324, 1
      %vm357 = vcmp.eq.s32.totalorder %v325, 1
      %vm358 = vcmp.eq.s32.totalorder %v326, 1
      %vm359 = vcmp.eq.s32.totalorder %v327, 1
      %vm360 = vcmp.eq.s32.totalorder %v328, 1
      %vm361 = vcmp.eq.s32.totalorder %v329, 1
      %vm362 = vcmp.eq.s32.totalorder %v330, 1
      %vm363 = vcmp.eq.s32.totalorder %v331, 1
      %v364 = vsel %vm332, %v136, -inf
      %v365 = vsel %vm333, %v137, -inf
      %v366 = vsel %vm334, %v138, -inf
      %v367 = vsel %vm335, %v139, -inf
      %v368 = vsel %vm336, %v140, -inf
      %v369 = vsel %vm337, %v141, -inf
      %v370 = vsel %vm338, %v142, -inf
      %v371 = vsel %vm339, %v143, -inf
      %v372 = vsel %vm340, %v144, -inf
      %v373 = vsel %vm341, %v145, -inf
      %v374 = vsel %vm342, %v146, -inf
      %v375 = vsel %vm343, %v147, -inf
      %v376 = vsel %vm344, %v148, -inf
      %v377 = vsel %vm345, %v149, -inf
      %v378 = vsel %vm346, %v150, -inf
      %v379 = vsel %vm347, %v151, -inf
      %v380 = vsel %vm348, %v152, -inf
      %v381 = vsel %vm349, %v153, -inf
      %v382 = vsel %vm350, %v154, -inf
      %v383 = vsel %vm351, %v155, -inf
      %v384 = vsel %vm352, %v156, -inf
      %v385 = vsel %vm353, %v157, -inf
      %v386 = vsel %vm354, %v158, -inf
      %v387 = vsel %vm355, %v159, -inf
      %v388 = vsel %vm356, %v160, -inf
      %v389 = vsel %vm357, %v161, -inf
      %v390 = vsel %vm358, %v162, -inf
      %v391 = vsel %vm359, %v163, -inf
      %v392 = vsel %vm360, %v164, -inf
      %v393 = vsel %vm361, %v165, -inf
      %v394 = vsel %vm362, %v166, -inf
      %v395 = vsel %vm363, %v167, -inf
      %vm396 = vcmask 31744
      %v397 = vsel %vm396, %v364, -inf
      %v398 = vsel %vm396, %v366, -inf
      %v399 = vsel %vm396, %v368, -inf
      %v400 = vmax.f32 %v397, %v399
      %v401 = vsel %vm396, %v370, -inf
      %v402 = vmax.f32 %v398, %v401
      %v403 = vsel %vm396, %v372, -inf
      %v404 = vmax.f32 %v400, %v403
      %v405 = vsel %vm396, %v374, -inf
      %v406 = vmax.f32 %v402, %v405
      %v407 = vsel %vm396, %v376, -inf
      %v408 = vmax.f32 %v404, %v407
      %v409 = vsel %vm396, %v378, -inf
      %v410 = vmax.f32 %v406, %v409
      %v411 = vsel %vm396, %v380, -inf
      %v412 = vmax.f32 %v408, %v411
      %v413 = vsel %vm396, %v382, -inf
      %v414 = vmax.f32 %v410, %v413
      %v415 = vsel %vm396, %v384, -inf
      %v416 = vmax.f32 %v412, %v415
      %v417 = vsel %vm396, %v386, -inf
      %v418 = vmax.f32 %v414, %v417
      %v419 = vsel %vm396, %v388, -inf
      %v420 = vmax.f32 %v416, %v419
      %v421 = vsel %vm396, %v390, -inf
      %v422 = vmax.f32 %v418, %v421
      %v423 = vsel %vm396, %v392, -inf
      %v424 = vmax.f32 %v420, %v423
      %v425 = vsel %vm396, %v394, -inf
      %v426 = vmax.f32 %v422, %v425
      %v427 = vmax.f32 %v424, %v426
      %v428 = vsel %vm396, %v365, -inf
      %v429 = vsel %vm396, %v367, -inf
      %v430 = vsel %vm396, %v369, -inf
      %v431 = vmax.f32 %v428, %v430
      %v432 = vsel %vm396, %v371, -inf
      %v433 = vmax.f32 %v429, %v432
      %v434 = vsel %vm396, %v373, -inf
      %v435 = vmax.f32 %v431, %v434
      %v436 = vsel %vm396, %v375, -inf
      %v437 = vmax.f32 %v433, %v436
      %v438 = vsel %vm396, %v377, -inf
      %v439 = vmax.f32 %v435, %v438
      %v440 = vsel %vm396, %v379, -inf
      %v441 = vmax.f32 %v437, %v440
      %v442 = vsel %vm396, %v381, -inf
      %v443 = vmax.f32 %v439, %v442
      %v444 = vsel %vm396, %v383, -inf
      %v445 = vmax.f32 %v441, %v444
      %v446 = vsel %vm396, %v385, -inf
      %v447 = vmax.f32 %v443, %v446
      %v448 = vsel %vm396, %v387, -inf
      %v449 = vmax.f32 %v445, %v448
      %v450 = vsel %vm396, %v389, -inf
      %v451 = vmax.f32 %v447, %v450
      %v452 = vsel %vm396, %v391, -inf
      %v453 = vmax.f32 %v449, %v452
      %v454 = vsel %vm396, %v393, -inf
      %v455 = vmax.f32 %v451, %v454
      %v456 = vsel %vm396, %v395, -inf
      %v457 = vmax.f32 %v453, %v456
      %v458 = vmax.f32 %v455, %v457
      %v459 = vsel %vm396, %v427, -inf
      %v460 = vsel %vm396, %v458, -inf
      %v461 = vmax.f32 %v459, %v460
      %v462 = vrot.slane %v461, 4
      %v463 = vmax.f32 %v461, %v462
      %v464 = vrot.slane %v463, 2
      %v465 = vmax.f32 %v463, %v464
      %v466 = vrot.slane %v465, 1
      %v467 = vmax.f32 %v465, %v466
      %p468 = scmp.le.s32.totalorder %s175, %s173
      %p469 = scmp.le.s32.totalorder %s179, %s177
      %p470 = por %p468, %p469
      %s471 = scalar_select %p470, 1, 0
      %v472 = vstv %s471
      %vm473 = vcmp.eq.s32.totalorder %v472, 1
      %v474 = vsel %vm473, 0.0, %v467
      %s475 = sadd.s32 %s171, 6
      %s476 = sld [smem:[#allocation3 + %s475]]
      %s477 = sadd.s32 %s171, 8
      %s478 = sld [smem:[#allocation3 + %s477]]
      %v479 = vstv %s476
      %vm480 = vcmp.ge.s32.totalorder %v169, %v479
      %vm481 = vcmp.ge.s32.totalorder %v170, %v479
      %vm482 = vmand %vm214, %vm480
      %vm483 = vmand %vm214, %vm481
      %vm484 = vmand %vm215, %vm480
      %vm485 = vmand %vm215, %vm481
      %vm486 = vmand %vm216, %vm480
      %vm487 = vmand %vm216, %vm481
      %vm488 = vmand %vm217, %vm480
      %vm489 = vmand %vm217, %vm481
      %vm490 = vmand %vm218, %vm480
      %vm491 = vmand %vm218, %vm481
      %vm492 = vmand %vm219, %vm480
      %vm493 = vmand %vm219, %vm481
      %vm494 = vmand %vm220, %vm480
      %vm495 = vmand %vm220, %vm481
      %vm496 = vmand %vm221, %vm480
      %vm497 = vmand %vm221, %vm481
      %vm498 = vmand %vm222, %vm480
      %vm499 = vmand %vm222, %vm481
      %vm500 = vmand %vm223, %vm480
      %vm501 = vmand %vm223, %vm481
      %vm502 = vmand %vm224, %vm480
      %vm503 = vmand %vm224, %vm481
      %vm504 = vmand %vm225, %vm480
      %vm505 = vmand %vm225, %vm481
      %vm506 = vmand %vm226, %vm480
      %vm507 = vmand %vm226, %vm481
      %vm508 = vmand %vm227, %vm480
      %vm509 = vmand %vm227, %vm481
      %vm510 = vmand %vm228, %vm480
      %vm511 = vmand %vm228, %vm481
      %vm512 = vmand %vm229, %vm480
      %vm513 = vmand %vm229, %vm481
      %v514 = vstv %s478
      %vm515 = vcmp.lt.s32.totalorder %v169, %v514
      %vm516 = vcmp.lt.s32.totalorder %v170, %v514
      %vm517 = vmand %vm482, %vm515
      %vm518 = vmand %vm483, %vm516
      %vm519 = vmand %vm484, %vm515
      %vm520 = vmand %vm485, %vm516
      %vm521 = vmand %vm486, %vm515
      %vm522 = vmand %vm487, %vm516
      %vm523 = vmand %vm488, %vm515
      %vm524 = vmand %vm489, %vm516
      %vm525 = vmand %vm490, %vm515
      %vm526 = vmand %vm491, %vm516
      %vm527 = vmand %vm492, %vm515
      %vm528 = vmand %vm493, %vm516
      %vm529 = vmand %vm494, %vm515
      %vm530 = vmand %vm495, %vm516
      %vm531 = vmand %vm496, %vm515
      %vm532 = vmand %vm497, %vm516
      %vm533 = vmand %vm498, %vm515
      %vm534 = vmand %vm499, %vm516
      %vm535 = vmand %vm500, %vm515
      %vm536 = vmand %vm501, %vm516
      %vm537 = vmand %vm502, %vm515
      %vm538 = vmand %vm503, %vm516
      %vm539 = vmand %vm504, %vm515
      %vm540 = vmand %vm505, %vm516
      %vm541 = vmand %vm506, %vm515
      %vm542 = vmand %vm507, %vm516
      %vm543 = vmand %vm508, %vm515
      %vm544 = vmand %vm509, %vm516
      %vm545 = vmand %vm510, %vm515
      %vm546 = vmand %vm511, %vm516
      %vm547 = vmand %vm512, %vm515
      %vm548 = vmand %vm513, %vm516
      %v549 = vsel %vm517, 1, 0
      %v550 = vsel %vm518, 1, 0
      %v551 = vsel %vm519, 1, 0
      %v552 = vsel %vm520, 1, 0
      %v553 = vsel %vm521, 1, 0
      %v554 = vsel %vm522, 1, 0
      %v555 = vsel %vm523, 1, 0
      %v556 = vsel %vm524, 1, 0
      %v557 = vsel %vm525, 1, 0
      %v558 = vsel %vm526, 1, 0
      %v559 = vsel %vm527, 1, 0
      %v560 = vsel %vm528, 1, 0
      %v561 = vsel %vm529, 1, 0
      %v562 = vsel %vm530, 1, 0
      %v563 = vsel %vm531, 1, 0
      %v564 = vsel %vm532, 1, 0
      %v565 = vsel %vm533, 1, 0
      %v566 = vsel %vm534, 1, 0
      %v567 = vsel %vm535, 1, 0
      %v568 = vsel %vm536, 1, 0
      %v569 = vsel %vm537, 1, 0
      %v570 = vsel %vm538, 1, 0
      %v571 = vsel %vm539, 1, 0
      %v572 = vsel %vm540, 1, 0
      %v573 = vsel %vm541, 1, 0
      %v574 = vsel %vm542, 1, 0
      %v575 = vsel %vm543, 1, 0
      %v576 = vsel %vm544, 1, 0
      %v577 = vsel %vm545, 1, 0
      %v578 = vsel %vm546, 1, 0
      %v579 = vsel %vm547, 1, 0
      %v580 = vsel %vm548, 1, 0
      %vm581 = vcmp.eq.s32.totalorder %v549, 1
      %vm582 = vcmp.eq.s32.totalorder %v550, 1
      %vm583 = vcmp.eq.s32.totalorder %v551, 1
      %vm584 = vcmp.eq.s32.totalorder %v552, 1
      %vm585 = vcmp.eq.s32.totalorder %v553, 1
      %vm586 = vcmp.eq.s32.totalorder %v554, 1
      %vm587 = vcmp.eq.s32.totalorder %v555, 1
      %vm588 = vcmp.eq.s32.totalorder %v556, 1
      %vm589 = vcmp.eq.s32.totalorder %v557, 1
      %vm590 = vcmp.eq.s32.totalorder %v558, 1
      %vm591 = vcmp.eq.s32.totalorder %v559, 1
      %vm592 = vcmp.eq.s32.totalorder %v560, 1
      %vm593 = vcmp.eq.s32.totalorder %v561, 1
      %vm594 = vcmp.eq.s32.totalorder %v562, 1
      %vm595 = vcmp.eq.s32.totalorder %v563, 1
      %vm596 = vcmp.eq.s32.totalorder %v564, 1
      %vm597 = vcmp.eq.s32.totalorder %v565, 1
      %vm598 = vcmp.eq.s32.totalorder %v566, 1
      %vm599 = vcmp.eq.s32.totalorder %v567, 1
      %vm600 = vcmp.eq.s32.totalorder %v568, 1
      %vm601 = vcmp.eq.s32.totalorder %v569, 1
      %vm602 = vcmp.eq.s32.totalorder %v570, 1
      %vm603 = vcmp.eq.s32.totalorder %v571, 1
      %vm604 = vcmp.eq.s32.totalorder %v572, 1
      %vm605 = vcmp.eq.s32.totalorder %v573, 1
      %vm606 = vcmp.eq.s32.totalorder %v574, 1
      %vm607 = vcmp.eq.s32.totalorder %v575, 1
      %vm608 = vcmp.eq.s32.totalorder %v576, 1
      %vm609 = vcmp.eq.s32.totalorder %v577, 1
      %vm610 = vcmp.eq.s32.totalorder %v578, 1
      %vm611 = vcmp.eq.s32.totalorder %v579, 1
      %vm612 = vcmp.eq.s32.totalorder %v580, 1
      %v613 = vsel %vm581, %v136, -inf
      %v614 = vsel %vm582, %v137, -inf
      %v615 = vsel %vm583, %v138, -inf
      %v616 = vsel %vm584, %v139, -inf
      %v617 = vsel %vm585, %v140, -inf
      %v618 = vsel %vm586, %v141, -inf
      %v619 = vsel %vm587, %v142, -inf
      %v620 = vsel %vm588, %v143, -inf
      %v621 = vsel %vm589, %v144, -inf
      %v622 = vsel %vm590, %v145, -inf
      %v623 = vsel %vm591, %v146, -inf
      %v624 = vsel %vm592, %v147, -inf
      %v625 = vsel %vm593, %v148, -inf
      %v626 = vsel %vm594, %v149, -inf
      %v627 = vsel %vm595, %v150, -inf
      %v628 = vsel %vm596, %v151, -inf
      %v629 = vsel %vm597, %v152, -inf
      %v630 = vsel %vm598, %v153, -inf
      %v631 = vsel %vm599, %v154, -inf
      %v632 = vsel %vm600, %v155, -inf
      %v633 = vsel %vm601, %v156, -inf
      %v634 = vsel %vm602, %v157, -inf
      %v635 = vsel %vm603, %v158, -inf
      %v636 = vsel %vm604, %v159, -inf
      %v637 = vsel %vm605, %v160, -inf
      %v638 = vsel %vm606, %v161, -inf
      %v639 = vsel %vm607, %v162, -inf
      %v640 = vsel %vm608, %v163, -inf
      %v641 = vsel %vm609, %v164, -inf
      %v642 = vsel %vm610, %v165, -inf
      %v643 = vsel %vm611, %v166, -inf
      %v644 = vsel %vm612, %v167, -inf
      %v645 = vsel %vm396, %v613, -inf
      %v646 = vsel %vm396, %v615, -inf
      %v647 = vsel %vm396, %v617, -inf
      %v648 = vmax.f32 %v645, %v647
      %v649 = vsel %vm396, %v619, -inf
      %v650 = vmax.f32 %v646, %v649
      %v651 = vsel %vm396, %v621, -inf
      %v652 = vmax.f32 %v648, %v651
      %v653 = vsel %vm396, %v623, -inf
      %v654 = vmax.f32 %v650, %v653
      %v655 = vsel %vm396, %v625, -inf
      %v656 = vmax.f32 %v652, %v655
      %v657 = vsel %vm396, %v627, -inf
      %v658 = vmax.f32 %v654, %v657
      %v659 = vsel %vm396, %v629, -inf
      %v660 = vmax.f32 %v656, %v659
      %v661 = vsel %vm396, %v631, -inf
      %v662 = vmax.f32 %v658, %v661
      %v663 = vsel %vm396, %v633, -inf
      %v664 = vmax.f32 %v660, %v663
      %v665 = vsel %vm396, %v635, -inf
      %v666 = vmax.f32 %v662, %v665
      %v667 = vsel %vm396, %v637, -inf
      %v668 = vmax.f32 %v664, %v667
      %v669 = vsel %vm396, %v639, -inf
      %v670 = vmax.f32 %v666, %v669
      %v671 = vsel %vm396, %v641, -inf
      %v672 = vmax.f32 %v668, %v671
      %v673 = vsel %vm396, %v643, -inf
      %v674 = vmax.f32 %v670, %v673
      %v675 = vmax.f32 %v672, %v674
      %v676 = vsel %vm396, %v614, -inf
      %v677 = vsel %vm396, %v616, -inf
      %v678 = vsel %vm396, %v618, -inf
      %v679 = vmax.f32 %v676, %v678
      %v680 = vsel %vm396, %v620, -inf
      %v681 = vmax.f32 %v677, %v680
      %v682 = vsel %vm396, %v622, -inf
      %v683 = vmax.f32 %v679, %v682
      %v684 = vsel %vm396, %v624, -inf
      %v685 = vmax.f32 %v681, %v684
      %v686 = vsel %vm396, %v626, -inf
      %v687 = vmax.f32 %v683, %v686
      %v688 = vsel %vm396, %v628, -inf
      %v689 = vmax.f32 %v685, %v688
      %v690 = vsel %vm396, %v630, -inf
      %v691 = vmax.f32 %v687, %v690
      %v692 = vsel %vm396, %v632, -inf
      %v693 = vmax.f32 %v689, %v692
      %v694 = vsel %vm396, %v634, -inf
      %v695 = vmax.f32 %v691, %v694
      %v696 = vsel %vm396, %v636, -inf
      %v697 = vmax.f32 %v693, %v696
      %v698 = vsel %vm396, %v638, -inf
      %v699 = vmax.f32 %v695, %v698
      %v700 = vsel %vm396, %v640, -inf
      %v701 = vmax.f32 %v697, %v700
      %v702 = vsel %vm396, %v642, -inf
      %v703 = vmax.f32 %v699, %v702
      %v704 = vsel %vm396, %v644, -inf
      %v705 = vmax.f32 %v701, %v704
      %v706 = vmax.f32 %v703, %v705
      %v707 = vsel %vm396, %v675, -inf
      %v708 = vsel %vm396, %v706, -inf
      %v709 = vmax.f32 %v707, %v708
      %v710 = vrot.slane %v709, 4
      %v711 = vmax.f32 %v709, %v710
      %v712 = vrot.slane %v711, 2
      %v713 = vmax.f32 %v711, %v712
      %v714 = vrot.slane %v713, 1
      %v715 = vmax.f32 %v713, %v714
      %p716 = scmp.le.s32.totalorder %s478, %s476
      %p717 = por %p468, %p716
      %s718 = scalar_select %p717, 1, 0
      %v719 = vstv %s718
      %vm720 = vcmp.eq.s32.totalorder %v719, 1
      %v721 = vsel %vm720, 0.0, %v715
      %s722 = sadd.s32 %s171, 2
      %s723 = sld [smem:[#allocation3 + %s722]]
      %s724 = sadd.s32 %s171, 4
      %s725 = sld [smem:[#allocation3 + %s724]]
      %v726 = vstv %s723
      %vm727 = vcmp.le.s32.totalorder %v726, 0
      %vm728 = vcmp.le.s32.totalorder %v726, 1
      %vm729 = vcmp.le.s32.totalorder %v726, 2
      %vm730 = vcmp.le.s32.totalorder %v726, 3
      %vm731 = vcmp.le.s32.totalorder %v726, 4
      %vm732 = vcmp.le.s32.totalorder %v726, 5
      %vm733 = vcmp.le.s32.totalorder %v726, 6
      %vm734 = vcmp.le.s32.totalorder %v726, 7
      %vm735 = vcmp.le.s32.totalorder %v726, 8
      %vm736 = vcmp.le.s32.totalorder %v726, 9
      %vm737 = vcmp.le.s32.totalorder %v726, 10
      %vm738 = vcmp.le.s32.totalorder %v726, 11
      %vm739 = vcmp.le.s32.totalorder %v726, 12
      %vm740 = vcmp.le.s32.totalorder %v726, 13
      %vm741 = vcmp.le.s32.totalorder %v726, 14
      %vm742 = vcmp.le.s32.totalorder %v726, 15
      %v743 = vstv %s725
      %vm744 = vcmp.gt.s32.totalorder %v743, 0
      %vm745 = vcmp.gt.s32.totalorder %v743, 1
      %vm746 = vcmp.gt.s32.totalorder %v743, 2
      %vm747 = vcmp.gt.s32.totalorder %v743, 3
      %vm748 = vcmp.gt.s32.totalorder %v743, 4
      %vm749 = vcmp.gt.s32.totalorder %v743, 5
      %vm750 = vcmp.gt.s32.totalorder %v743, 6
      %vm751 = vcmp.gt.s32.totalorder %v743, 7
      %vm752 = vcmp.gt.s32.totalorder %v743, 8
      %vm753 = vcmp.gt.s32.totalorder %v743, 9
      %vm754 = vcmp.gt.s32.totalorder %v743, 10
      %vm755 = vcmp.gt.s32.totalorder %v743, 11
      %vm756 = vcmp.gt.s32.totalorder %v743, 12
      %vm757 = vcmp.gt.s32.totalorder %v743, 13
      %vm758 = vcmp.gt.s32.totalorder %v743, 14
      %vm759 = vcmp.gt.s32.totalorder %v743, 15
      %vm760 = vmand %vm727, %vm744
      %vm761 = vmand %vm728, %vm745
      %vm762 = vmand %vm729, %vm746
      %vm763 = vmand %vm730, %vm747
      %vm764 = vmand %vm731, %vm748
      %vm765 = vmand %vm732, %vm749
      %vm766 = vmand %vm733, %vm750
      %vm767 = vmand %vm734, %vm751
      %vm768 = vmand %vm735, %vm752
      %vm769 = vmand %vm736, %vm753
      %vm770 = vmand %vm737, %vm754
      %vm771 = vmand %vm738, %vm755
      %vm772 = vmand %vm739, %vm756
      %vm773 = vmand %vm740, %vm757
      %vm774 = vmand %vm741, %vm758
      %vm775 = vmand %vm742, %vm759
      %vm776 = vmand %vm760, %vm231
      %vm777 = vmand %vm760, %vm232
      %vm778 = vmand %vm761, %vm231
      %vm779 = vmand %vm761, %vm232
      %vm780 = vmand %vm762, %vm231
      %vm781 = vmand %vm762, %vm232
      %vm782 = vmand %vm763, %vm231
      %vm783 = vmand %vm763, %vm232
      %vm784 = vmand %vm764, %vm231
      %vm785 = vmand %vm764, %vm232
      %vm786 = vmand %vm765, %vm231
      %vm787 = vmand %vm765, %vm232
      %vm788 = vmand %vm766, %vm231
      %vm789 = vmand %vm766, %vm232
      %vm790 = vmand %vm767, %vm231
      %vm791 = vmand %vm767, %vm232
      %vm792 = vmand %vm768, %vm231
      %vm793 = vmand %vm768, %vm232
      %vm794 = vmand %vm769, %vm231
      %vm795 = vmand %vm769, %vm232
      %vm796 = vmand %vm770, %vm231
      %vm797 = vmand %vm770, %vm232
      %vm798 = vmand %vm771, %vm231
      %vm799 = vmand %vm771, %vm232
      %vm800 = vmand %vm772, %vm231
      %vm801 = vmand %vm772, %vm232
      %vm802 = vmand %vm773, %vm231
      %vm803 = vmand %vm773, %vm232
      %vm804 = vmand %vm774, %vm231
      %vm805 = vmand %vm774, %vm232
      %vm806 = vmand %vm775, %vm231
      %vm807 = vmand %vm775, %vm232
      %vm808 = vmand %vm776, %vm266
      %vm809 = vmand %vm777, %vm267
      %vm810 = vmand %vm778, %vm266
      %vm811 = vmand %vm779, %vm267
      %vm812 = vmand %vm780, %vm266
      %vm813 = vmand %vm781, %vm267
      %vm814 = vmand %vm782, %vm266
      %vm815 = vmand %vm783, %vm267
      %vm816 = vmand %vm784, %vm266
      %vm817 = vmand %vm785, %vm267
      %vm818 = vmand %vm786, %vm266
      %vm819 = vmand %vm787, %vm267
      %vm820 = vmand %vm788, %vm266
      %vm821 = vmand %vm789, %vm267
      %vm822 = vmand %vm790, %vm266
      %vm823 = vmand %vm791, %vm267
      %vm824 = vmand %vm792, %vm266
      %vm825 = vmand %vm793, %vm267
      %vm826 = vmand %vm794, %vm266
      %vm827 = vmand %vm795, %vm267
      %vm828 = vmand %vm796, %vm266
      %vm829 = vmand %vm797, %vm267
      %vm830 = vmand %vm798, %vm266
      %vm831 = vmand %vm799, %vm267
      %vm832 = vmand %vm800, %vm266
      %vm833 = vmand %vm801, %vm267
      %vm834 = vmand %vm802, %vm266
      %vm835 = vmand %vm803, %vm267
      %vm836 = vmand %vm804, %vm266
      %vm837 = vmand %vm805, %vm267
      %vm838 = vmand %vm806, %vm266
      %vm839 = vmand %vm807, %vm267
      %v840 = vsel %vm808, 1, 0
      %v841 = vsel %vm809, 1, 0
      %v842 = vsel %vm810, 1, 0
      %v843 = vsel %vm811, 1, 0
      %v844 = vsel %vm812, 1, 0
      %v845 = vsel %vm813, 1, 0
      %v846 = vsel %vm814, 1, 0
      %v847 = vsel %vm815, 1, 0
      %v848 = vsel %vm816, 1, 0
      %v849 = vsel %vm817, 1, 0
      %v850 = vsel %vm818, 1, 0
      %v851 = vsel %vm819, 1, 0
      %v852 = vsel %vm820, 1, 0
      %v853 = vsel %vm821, 1, 0
      %v854 = vsel %vm822, 1, 0
      %v855 = vsel %vm823, 1, 0
      %v856 = vsel %vm824, 1, 0
      %v857 = vsel %vm825, 1, 0
      %v858 = vsel %vm826, 1, 0
      %v859 = vsel %vm827, 1, 0
      %v860 = vsel %vm828, 1, 0
      %v861 = vsel %vm829, 1, 0
      %v862 = vsel %vm830, 1, 0
      %v863 = vsel %vm831, 1, 0
      %v864 = vsel %vm832, 1, 0
      %v865 = vsel %vm833, 1, 0
      %v866 = vsel %vm834, 1, 0
      %v867 = vsel %vm835, 1, 0
      %v868 = vsel %vm836, 1, 0
      %v869 = vsel %vm837, 1, 0
      %v870 = vsel %vm838, 1, 0
      %v871 = vsel %vm839, 1, 0
      %vm872 = vcmp.eq.s32.totalorder %v840, 1
      %vm873 = vcmp.eq.s32.totalorder %v841, 1
      %vm874 = vcmp.eq.s32.totalorder %v842, 1
      %vm875 = vcmp.eq.s32.totalorder %v843, 1
      %vm876 = vcmp.eq.s32.totalorder %v844, 1
      %vm877 = vcmp.eq.s32.totalorder %v845, 1
      %vm878 = vcmp.eq.s32.totalorder %v846, 1
      %vm879 = vcmp.eq.s32.totalorder %v847, 1
      %vm880 = vcmp.eq.s32.totalorder %v848, 1
      %vm881 = vcmp.eq.s32.totalorder %v849, 1
      %vm882 = vcmp.eq.s32.totalorder %v850, 1
      %vm883 = vcmp.eq.s32.totalorder %v851, 1
      %vm884 = vcmp.eq.s32.totalorder %v852, 1
      %vm885 = vcmp.eq.s32.totalorder %v853, 1
      %vm886 = vcmp.eq.s32.totalorder %v854, 1
      %vm887 = vcmp.eq.s32.totalorder %v855, 1
      %vm888 = vcmp.eq.s32.totalorder %v856, 1
      %vm889 = vcmp.eq.s32.totalorder %v857, 1
      %vm890 = vcmp.eq.s32.totalorder %v858, 1
      %vm891 = vcmp.eq.s32.totalorder %v859, 1
      %vm892 = vcmp.eq.s32.totalorder %v860, 1
      %vm893 = vcmp.eq.s32.totalorder %v861, 1
      %vm894 = vcmp.eq.s32.totalorder %v862, 1
      %vm895 = vcmp.eq.s32.totalorder %v863, 1
      %vm896 = vcmp.eq.s32.totalorder %v864, 1
      %vm897 = vcmp.eq.s32.totalorder %v865, 1
      %vm898 = vcmp.eq.s32.totalorder %v866, 1
      %vm899 = vcmp.eq.s32.totalorder %v867, 1
      %vm900 = vcmp.eq.s32.totalorder %v868, 1
      %vm901 = vcmp.eq.s32.totalorder %v869, 1
      %vm902 = vcmp.eq.s32.totalorder %v870, 1
      %vm903 = vcmp.eq.s32.totalorder %v871, 1
      %v904 = vsel %vm872, %v136, -inf
      %v905 = vsel %vm873, %v137, -inf
      %v906 = vsel %vm874, %v138, -inf
      %v907 = vsel %vm875, %v139, -inf
      %v908 = vsel %vm876, %v140, -inf
      %v909 = vsel %vm877, %v141, -inf
      %v910 = vsel %vm878, %v142, -inf
      %v911 = vsel %vm879, %v143, -inf
      %v912 = vsel %vm880, %v144, -inf
      %v913 = vsel %vm881, %v145, -inf
      %v914 = vsel %vm882, %v146, -inf
      %v915 = vsel %vm883, %v147, -inf
      %v916 = vsel %vm884, %v148, -inf
      %v917 = vsel %vm885, %v149, -inf
      %v918 = vsel %vm886, %v150, -inf
      %v919 = vsel %vm887, %v151, -inf
      %v920 = vsel %vm888, %v152, -inf
      %v921 = vsel %vm889, %v153, -inf
      %v922 = vsel %vm890, %v154, -inf
      %v923 = vsel %vm891, %v155, -inf
      %v924 = vsel %vm892, %v156, -inf
      %v925 = vsel %vm893, %v157, -inf
      %v926 = vsel %vm894, %v158, -inf
      %v927 = vsel %vm895, %v159, -inf
      %v928 = vsel %vm896, %v160, -inf
      %v929 = vsel %vm897, %v161, -inf
      %v930 = vsel %vm898, %v162, -inf
      %v931 = vsel %vm899, %v163, -inf
      %v932 = vsel %vm900, %v164, -inf
      %v933 = vsel %vm901, %v165, -inf
      %v934 = vsel %vm902, %v166, -inf
      %v935 = vsel %vm903, %v167, -inf
      %v936 = vsel %vm396, %v904, -inf
      %v937 = vsel %vm396, %v906, -inf
      %v938 = vsel %vm396, %v908, -inf
      %v939 = vmax.f32 %v936, %v938
      %v940 = vsel %vm396, %v910, -inf
      %v941 = vmax.f32 %v937, %v940
      %v942 = vsel %vm396, %v912, -inf
      %v943 = vmax.f32 %v939, %v942
      %v944 = vsel %vm396, %v914, -inf
      %v945 = vmax.f32 %v941, %v944
      %v946 = vsel %vm396, %v916, -inf
      %v947 = vmax.f32 %v943, %v946
      %v948 = vsel %vm396, %v918, -inf
      %v949 = vmax.f32 %v945, %v948
      %v950 = vsel %vm396, %v920, -inf
      %v951 = vmax.f32 %v947, %v950
      %v952 = vsel %vm396, %v922, -inf
      %v953 = vmax.f32 %v949, %v952
      %v954 = vsel %vm396, %v924, -inf
      %v955 = vmax.f32 %v951, %v954
      %v956 = vsel %vm396, %v926, -inf
      %v957 = vmax.f32 %v953, %v956
      %v958 = vsel %vm396, %v928, -inf
      %v959 = vmax.f32 %v955, %v958
      %v960 = vsel %vm396, %v930, -inf
      %v961 = vmax.f32 %v957, %v960
      %v962 = vsel %vm396, %v932, -inf
      %v963 = vmax.f32 %v959, %v962
      %v964 = vsel %vm396, %v934, -inf
      %v965 = vmax.f32 %v961, %v964
      %v966 = vmax.f32 %v963, %v965
      %v967 = vsel %vm396, %v905, -inf
      %v968 = vsel %vm396, %v907, -inf
      %v969 = vsel %vm396, %v909, -inf
      %v970 = vmax.f32 %v967, %v969
      %v971 = vsel %vm396, %v911, -inf
      %v972 = vmax.f32 %v968, %v971
      %v973 = vsel %vm396, %v913, -inf
      %v974 = vmax.f32 %v970, %v973
      %v975 = vsel %vm396, %v915, -inf
      %v976 = vmax.f32 %v972, %v975
      %v977 = vsel %vm396, %v917, -inf
      %v978 = vmax.f32 %v974, %v977
      %v979 = vsel %vm396, %v919, -inf
      %v980 = vmax.f32 %v976, %v979
      %v981 = vsel %vm396, %v921, -inf
      %v982 = vmax.f32 %v978, %v981
      %v983 = vsel %vm396, %v923, -inf
      %v984 = vmax.f32 %v980, %v983
      %v985 = vsel %vm396, %v925, -inf
      %v986 = vmax.f32 %v982, %v985
      %v987 = vsel %vm396, %v927, -inf
      %v988 = vmax.f32 %v984, %v987
      %v989 = vsel %vm396, %v929, -inf
      %v990 = vmax.f32 %v986, %v989
      %v991 = vsel %vm396, %v931, -inf
      %v992 = vmax.f32 %v988, %v991
      %v993 = vsel %vm396, %v933, -inf
      %v994 = vmax.f32 %v990, %v993
      %v995 = vsel %vm396, %v935, -inf
      %v996 = vmax.f32 %v992, %v995
      %v997 = vmax.f32 %v994, %v996
      %v998 = vsel %vm396, %v966, -inf
      %v999 = vsel %vm396, %v997, -inf
      %v1000 = vmax.f32 %v998, %v999
      %v1001 = vrot.slane %v1000, 4
      %v1002 = vmax.f32 %v1000, %v1001
      %v1003 = vrot.slane %v1002, 2
      %v1004 = vmax.f32 %v1002, %v1003
      %v1005 = vrot.slane %v1004, 1
      %v1006 = vmax.f32 %v1004, %v1005
      %p1007 = scmp.le.s32.totalorder %s725, %s723
      %p1008 = por %p1007, %p469
      %s1009 = scalar_select %p1008, 1, 0
      %v1010 = vstv %s1009
      %vm1011 = vcmp.eq.s32.totalorder %v1010, 1
      %v1012 = vsel %vm1011, 0.0, %v1006
      %vm1013 = vmand %vm760, %vm480
      %vm1014 = vmand %vm760, %vm481
      %vm1015 = vmand %vm761, %vm480
      %vm1016 = vmand %vm761, %vm481
      %vm1017 = vmand %vm762, %vm480
      %vm1018 = vmand %vm762, %vm481
      %vm1019 = vmand %vm763, %vm480
      %vm1020 = vmand %vm763, %vm481
      %vm1021 = vmand %vm764, %vm480
      %vm1022 = vmand %vm764, %vm481
      %vm1023 = vmand %vm765, %vm480
      %vm1024 = vmand %vm765, %vm481
      %vm1025 = vmand %vm766, %vm480
      %vm1026 = vmand %vm766, %vm481
      %vm1027 = vmand %vm767, %vm480
      %vm1028 = vmand %vm767, %vm481
      %vm1029 = vmand %vm768, %vm480
      %vm1030 = vmand %vm768, %vm481
      %vm1031 = vmand %vm769, %vm480
      %vm1032 = vmand %vm769, %vm481
      %vm1033 = vmand %vm770, %vm480
      %vm1034 = vmand %vm770, %vm481
      %vm1035 = vmand %vm771, %vm480
      %vm1036 = vmand %vm771, %vm481
      %vm1037 = vmand %vm772, %vm480
      %vm1038 = vmand %vm772, %vm481
      %vm1039 = vmand %vm773, %vm480
      %vm1040 = vmand %vm773, %vm481
      %vm1041 = vmand %vm774, %vm480
      %vm1042 = vmand %vm774, %vm481
      %vm1043 = vmand %vm775, %vm480
      %vm1044 = vmand %vm775, %vm481
      %vm1045 = vmand %vm1013, %vm515
      %vm1046 = vmand %vm1014, %vm516
      %vm1047 = vmand %vm1015, %vm515
      %vm1048 = vmand %vm1016, %vm516
      %vm1049 = vmand %vm1017, %vm515
      %vm1050 = vmand %vm1018, %vm516
      %vm1051 = vmand %vm1019, %vm515
      %vm1052 = vmand %vm1020, %vm516
      %vm1053 = vmand %vm1021, %vm515
      %vm1054 = vmand %vm1022, %vm516
      %vm1055 = vmand %vm1023, %vm515
      %vm1056 = vmand %vm1024, %vm516
      %vm1057 = vmand %vm1025, %vm515
      %vm1058 = vmand %vm1026, %vm516
      %vm1059 = vmand %vm1027, %vm515
      %vm1060 = vmand %vm1028, %vm516
      %vm1061 = vmand %vm1029, %vm515
      %vm1062 = vmand %vm1030, %vm516
      %vm1063 = vmand %vm1031, %vm515
      %vm1064 = vmand %vm1032, %vm516
      %vm1065 = vmand %vm1033, %vm515
      %vm1066 = vmand %vm1034, %vm516
      %vm1067 = vmand %vm1035, %vm515
      %vm1068 = vmand %vm1036, %vm516
      %vm1069 = vmand %vm1037, %vm515
      %vm1070 = vmand %vm1038, %vm516
      %vm1071 = vmand %vm1039, %vm515
      %vm1072 = vmand %vm1040, %vm516
      %vm1073 = vmand %vm1041, %vm515
      %vm1074 = vmand %vm1042, %vm516
      %vm1075 = vmand %vm1043, %vm515
      %vm1076 = vmand %vm1044, %vm516
      %v1077 = vsel %vm1045, 1, 0
      %v1078 = vsel %vm1046, 1, 0
      %v1079 = vsel %vm1047, 1, 0
      %v1080 = vsel %vm1048, 1, 0
      %v1081 = vsel %vm1049, 1, 0
      %v1082 = vsel %vm1050, 1, 0
      %v1083 = vsel %vm1051, 1, 0
      %v1084 = vsel %vm1052, 1, 0
      %v1085 = vsel %vm1053, 1, 0
      %v1086 = vsel %vm1054, 1, 0
      %v1087 = vsel %vm1055, 1, 0
      %v1088 = vsel %vm1056, 1, 0
      %v1089 = vsel %vm1057, 1, 0
      %v1090 = vsel %vm1058, 1, 0
      %v1091 = vsel %vm1059, 1, 0
      %v1092 = vsel %vm1060, 1, 0
      %v1093 = vsel %vm1061, 1, 0
      %v1094 = vsel %vm1062, 1, 0
      %v1095 = vsel %vm1063, 1, 0
      %v1096 = vsel %vm1064, 1, 0
      %v1097 = vsel %vm1065, 1, 0
      %v1098 = vsel %vm1066, 1, 0
      %v1099 = vsel %vm1067, 1, 0
      %v1100 = vsel %vm1068, 1, 0
      %v1101 = vsel %vm1069, 1, 0
      %v1102 = vsel %vm1070, 1, 0
      %v1103 = vsel %vm1071, 1, 0
      %v1104 = vsel %vm1072, 1, 0
      %v1105 = vsel %vm1073, 1, 0
      %v1106 = vsel %vm1074, 1, 0
      %v1107 = vsel %vm1075, 1, 0
      %v1108 = vsel %vm1076, 1, 0
      %vm1109 = vcmp.eq.s32.totalorder %v1077, 1
      %vm1110 = vcmp.eq.s32.totalorder %v1078, 1
      %vm1111 = vcmp.eq.s32.totalorder %v1079, 1
      %vm1112 = vcmp.eq.s32.totalorder %v1080, 1
      %vm1113 = vcmp.eq.s32.totalorder %v1081, 1
      %vm1114 = vcmp.eq.s32.totalorder %v1082, 1
      %vm1115 = vcmp.eq.s32.totalorder %v1083, 1
      %vm1116 = vcmp.eq.s32.totalorder %v1084, 1
      %vm1117 = vcmp.eq.s32.totalorder %v1085, 1
      %vm1118 = vcmp.eq.s32.totalorder %v1086, 1
      %vm1119 = vcmp.eq.s32.totalorder %v1087, 1
      %vm1120 = vcmp.eq.s32.totalorder %v1088, 1
      %vm1121 = vcmp.eq.s32.totalorder %v1089, 1
      %vm1122 = vcmp.eq.s32.totalorder %v1090, 1
      %vm1123 = vcmp.eq.s32.totalorder %v1091, 1
      %vm1124 = vcmp.eq.s32.totalorder %v1092, 1
      %vm1125 = vcmp.eq.s32.totalorder %v1093, 1
      %vm1126 = vcmp.eq.s32.totalorder %v1094, 1
      %vm1127 = vcmp.eq.s32.totalorder %v1095, 1
      %vm1128 = vcmp.eq.s32.totalorder %v1096, 1
      %vm1129 = vcmp.eq.s32.totalorder %v1097, 1
      %vm1130 = vcmp.eq.s32.totalorder %v1098, 1
      %vm1131 = vcmp.eq.s32.totalorder %v1099, 1
      %vm1132 = vcmp.eq.s32.totalorder %v1100, 1
      %vm1133 = vcmp.eq.s32.totalorder %v1101, 1
      %vm1134 = vcmp.eq.s32.totalorder %v1102, 1
      %vm1135 = vcmp.eq.s32.totalorder %v1103, 1
      %vm1136 = vcmp.eq.s32.totalorder %v1104, 1
      %vm1137 = vcmp.eq.s32.totalorder %v1105, 1
      %vm1138 = vcmp.eq.s32.totalorder %v1106, 1
      %vm1139 = vcmp.eq.s32.totalorder %v1107, 1
      %vm1140 = vcmp.eq.s32.totalorder %v1108, 1
      %v1141 = vsel %vm1109, %v136, -inf
      %v1142 = vsel %vm1110, %v137, -inf
      %v1143 = vsel %vm1111, %v138, -inf
      %v1144 = vsel %vm1112, %v139, -inf
      %v1145 = vsel %vm1113, %v140, -inf
      %v1146 = vsel %vm1114, %v141, -inf
      %v1147 = vsel %vm1115, %v142, -inf
      %v1148 = vsel %vm1116, %v143, -inf
      %v1149 = vsel %vm1117, %v144, -inf
      %v1150 = vsel %vm1118, %v145, -inf
      %v1151 = vsel %vm1119, %v146, -inf
      %v1152 = vsel %vm1120, %v147, -inf
      %v1153 = vsel %vm1121, %v148, -inf
      %v1154 = vsel %vm1122, %v149, -inf
      %v1155 = vsel %vm1123, %v150, -inf
      %v1156 = vsel %vm1124, %v151, -inf
      %v1157 = vsel %vm1125, %v152, -inf
      %v1158 = vsel %vm1126, %v153, -inf
      %v1159 = vsel %vm1127, %v154, -inf
      %v1160 = vsel %vm1128, %v155, -inf
      %v1161 = vsel %vm1129, %v156, -inf
      %v1162 = vsel %vm1130, %v157, -inf
      %v1163 = vsel %vm1131, %v158, -inf
      %v1164 = vsel %vm1132, %v159, -inf
      %v1165 = vsel %vm1133, %v160, -inf
      %v1166 = vsel %vm1134, %v161, -inf
      %v1167 = vsel %vm1135, %v162, -inf
      %v1168 = vsel %vm1136, %v163, -inf
      %v1169 = vsel %vm1137, %v164, -inf
      %v1170 = vsel %vm1138, %v165, -inf
      %v1171 = vsel %vm1139, %v166, -inf
      %v1172 = vsel %vm1140, %v167, -inf
      %v1173 = vsel %vm396, %v1141, -inf
      %v1174 = vsel %vm396, %v1143, -inf
      %v1175 = vsel %vm396, %v1145, -inf
      %v1176 = vmax.f32 %v1173, %v1175
      %v1177 = vsel %vm396, %v1147, -inf
      %v1178 = vmax.f32 %v1174, %v1177
      %v1179 = vsel %vm396, %v1149, -inf
      %v1180 = vmax.f32 %v1176, %v1179
      %v1181 = vsel %vm396, %v1151, -inf
      %v1182 = vmax.f32 %v1178, %v1181
      %v1183 = vsel %vm396, %v1153, -inf
      %v1184 = vmax.f32 %v1180, %v1183
      %v1185 = vsel %vm396, %v1155, -inf
      %v1186 = vmax.f32 %v1182, %v1185
      %v1187 = vsel %vm396, %v1157, -inf
      %v1188 = vmax.f32 %v1184, %v1187
      %v1189 = vsel %vm396, %v1159, -inf
      %v1190 = vmax.f32 %v1186, %v1189
      %v1191 = vsel %vm396, %v1161, -inf
      %v1192 = vmax.f32 %v1188, %v1191
      %v1193 = vsel %vm396, %v1163, -inf
      %v1194 = vmax.f32 %v1190, %v1193
      %v1195 = vsel %vm396, %v1165, -inf
      %v1196 = vmax.f32 %v1192, %v1195
      %v1197 = vsel %vm396, %v1167, -inf
      %v1198 = vmax.f32 %v1194, %v1197
      %v1199 = vsel %vm396, %v1169, -inf
      %v1200 = vmax.f32 %v1196, %v1199
      %v1201 = vsel %vm396, %v1171, -inf
      %v1202 = vmax.f32 %v1198, %v1201
      %v1203 = vmax.f32 %v1200, %v1202
      %v1204 = vsel %vm396, %v1142, -inf
      %v1205 = vsel %vm396, %v1144, -inf
      %v1206 = vsel %vm396, %v1146, -inf
      %v1207 = vmax.f32 %v1204, %v1206
      %v1208 = vsel %vm396, %v1148, -inf
      %v1209 = vmax.f32 %v1205, %v1208
      %v1210 = vsel %vm396, %v1150, -inf
      %v1211 = vmax.f32 %v1207, %v1210
      %v1212 = vsel %vm396, %v1152, -inf
      %v1213 = vmax.f32 %v1209, %v1212
      %v1214 = vsel %vm396, %v1154, -inf
      %v1215 = vmax.f32 %v1211, %v1214
      %v1216 = vsel %vm396, %v1156, -inf
      %v1217 = vmax.f32 %v1213, %v1216
      %v1218 = vsel %vm396, %v1158, -inf
      %v1219 = vmax.f32 %v1215, %v1218
      %v1220 = vsel %vm396, %v1160, -inf
      %v1221 = vmax.f32 %v1217, %v1220
      %v1222 = vsel %vm396, %v1162, -inf
      %v1223 = vmax.f32 %v1219, %v1222
      %v1224 = vsel %vm396, %v1164, -inf
      %v1225 = vmax.f32 %v1221, %v1224
      %v1226 = vsel %vm396, %v1166, -inf
      %v1227 = vmax.f32 %v1223, %v1226
      %v1228 = vsel %vm396, %v1168, -inf
      %v1229 = vmax.f32 %v1225, %v1228
      %v1230 = vsel %vm396, %v1170, -inf
      %v1231 = vmax.f32 %v1227, %v1230
      %v1232 = vsel %vm396, %v1172, -inf
      %v1233 = vmax.f32 %v1229, %v1232
      %v1234 = vmax.f32 %v1231, %v1233
      %v1235 = vsel %vm396, %v1203, -inf
      %v1236 = vsel %vm396, %v1234, -inf
      %v1237 = vmax.f32 %v1235, %v1236
      %v1238 = vrot.slane %v1237, 4
      %v1239 = vmax.f32 %v1237, %v1238
      %v1240 = vrot.slane %v1239, 2
      %v1241 = vmax.f32 %v1239, %v1240
      %v1242 = vrot.slane %v1241, 1
      %v1243 = vmax.f32 %v1241, %v1242
      %p1244 = por %p1007, %p716
      %s1245 = scalar_select %p1244, 1, 0
      %v1246 = vstv %s1245
      %vm1247 = vcmp.eq.s32.totalorder %v1246, 1
      %v1248 = vsel %vm1247, 0.0, %v1243
      %vm1249 = vcmask 1040384
      %v1250 = vsel %vm1249, %v474, %v721
      %vm1251 = vcmask 1041408
      %v1252 = vsel %vm1251, %v1250, %v1012
      %vm1253 = vcmask 1042432
      %v1254 = vsel %vm1253, %v1252, %v1248
      %vm1255 = vcmask 27648
      %1256 = vst.msk [vmem:[%s135] sm:$0xf] %vm1255, %v1254
      %p1257 = scmp.lt.s32.totalorder %s19, 7
      %s1258 = scalar_select %p1257, %s19, 7
      %s1259 = smul.addr %s1258, 4
      %s1260 = scalar_lea.vmem %s2, %s1259
      // Predicated region
      $region25: #{bbox_head_forward.2} parent=23 // pred_check
        %p1261 = pneg %p67
      $region26: #{bbox_head_forward.2} parent=23 // pred_check_branch
        %1263 = sbr.rel (%p1261) target = $region28
      $region27: #{bbox_head_forward.2} parent=23 // pred_region
        _
      $region28: #{bbox_head_forward.2} parent=23 // pred_fallthru
        _
    $region24: #{bbox_head_forward.2} parent=5 // pred_fallthru
      _
    %p1264 = scmp.le.s32.totalorder 2, %s14
    // Predicated region
    $region29: #{bbox_head_forward.2} parent=5 // pred_check
      %p1265 = pneg %p1264
    $region30: #{bbox_head_forward.2} parent=5 // pred_check_branch
      %1267 = sbr.rel (%p1265) target = $region32
    $region31: #{bbox_head_forward.2} parent=5 // pred_region
      %s1268 = ssub.s32 %s14, 2
      // Predicated region
      $region33: #{bbox_head_forward.2} parent=31 // pred_check
        %p1269 = pneg %p73
      $region34: #{bbox_head_forward.2} parent=31 // pred_check_branch
        %1271 = sbr.rel (%p1269) target = $region36
      $region35: #{bbox_head_forward.2} parent=31 // pred_region
        %p1272 = scmp.lt.s32.totalorder %s20, 7
        %s1273 = scalar_select %p1272, %s20, 7
        %s1274 = smul.addr %s1273, 4
        %s1275 = scalar_lea.vmem %s2, %s1274
      $region36: #{bbox_head_forward.2} parent=31 // pred_fallthru
        _
    $region32: #{bbox_head_forward.2} parent=5 // pred_fallthru
      _
  $region6: #{bbox_head_forward.2} parent=0 // loop_footer
    %s18 = sadd.s32 1, %s14
  $region7: #{bbox_head_forward.2} parent=0 // loop_footer_branch
    %13 = sbr.rel target = $region3
  $region8: #{bbox_head_forward.2} parent=0 // loop_exit
    _

</llo_original>
